<compile_context>
chip_gen: v6e
topology: v6e:2x2x1
jax: 0.10.0
libtpu: 0.0.40
codegen_flags: <defaults>
</compile_context>

<pallas_src>
import functools
import math

import jax
import jax.numpy as jnp
from jax import lax
from jax.experimental import pallas as pl
from jax.experimental.pallas import tpu as pltpu


# ----------------------------- in-kernel helpers -----------------------------

def _erf(x):
    # float32-accurate erf (Abramowitz & Stegun 7.1.26, |err| < 1.5e-7 in exact math).
    # The 1/(1+p|x|) term runs on the EUP (approx reciprocal, ~2^-12 rel err) so the
    # large (S, F) FFN tensor does not pay a full VALU divide.
    # TODO(synk): tanh-form GELU (single EUP tanh) if the tolerance budget allows.
    p = 0.3275911
    a1, a2, a3, a4, a5 = 0.254829592, -0.284496736, 1.421413741, -1.453152027, 1.061405429
    ax = jnp.abs(x)
    t = pl.reciprocal(1.0 + p * ax, approx=True)
    poly = ((((a5 * t + a4) * t + a3) * t + a2) * t + a1) * t
    y = 1.0 - poly * jnp.exp(-ax * ax)
    return jnp.where(x < 0, -y, y)


def _gelu(x):
    # UER: x * 0.5 * (1 + erf(x / sqrt(2)))
    return x * 0.5 * (1.0 + _erf(x * 0.7071067811865476))


def _uer_layer_norm(x, gamma, beta, eps=1e-6):
    # UER LayerNorm: mean / unbiased std over last dim, eps added to std (not var).
    # Reciprocal on the reduced (S,1) column + broadcast multiply instead of an
    # (S,D) divide.
    d = x.shape[-1]
    mean = jnp.mean(x, axis=-1, keepdims=True)
    diff = x - mean
    var = jnp.sum(diff * diff, axis=-1, keepdims=True) * (1.0 / (d - 1))
    inv = pl.reciprocal(jnp.sqrt(var) + eps)          # exact; (S,1) column only
    return (diff * inv) * gamma + beta


# --------------------------------- kernel ------------------------------------

def encoder_kernel(hidden_ref, maskb_ref, pos_ref,
                   wqkv_ref, bqkv_ref, wo_ref, bo_ref,
                   ln1g_ref, ln1b_ref, w1_ref, b1_ref, w2_ref, b2_ref,
                   ln2g_ref, ln2b_ref,
                   out_ref, bias_ref, ctx_ref, *, layers_num):
    x0 = hidden_ref[0]                      # (S, D) f32
    S, D = x0.shape
    H = pos_ref.shape[0]
    Dh = D // H
    P = 2 * Dh                              # head-pair width (128 lanes at BERT scale)

    # Combined additive bias (pos_bias/sqrt(Dh) + key mask), computed ONCE per batch
    # row and reused by every layer (hoisted out of the layer loop).
    # TODO(synk): store bf16 / stream per head for long S on v7x (64 MiB VMEM).
    bias_ref[...] = pos_ref[...].astype(jnp.float32) + maskb_ref[...]

    def layer(_, x):
        xb = x.astype(jnp.bfloat16)
        # Fused QKV projection: one (S,D)x(D,3D) bf16 MXU matmul, f32 accumulation.
        # Wq / bq are pre-scaled by 1/sqrt(Dh) in the wrapper.
        qkv = jnp.dot(xb, wqkv_ref[...], preferred_element_type=jnp.float32) + bqkv_ref[0]
        qkvb = qkv.astype(jnp.bfloat16)     # (S, 3D), column order [Q | K | V]

        def head_ctx(h):
            # Static column slices; Dh<128 intra-vreg lane selects are inherent to the
            # per-head layout (the lane-misaligned per-head REF slices of Wo are gone).
            # TODO(synk): full leading-head-axis (H,S,Dh) layout / flash-style query
            #             tiling for long S and a second parallel grid axis (v7x B=1).
            qh = qkvb[:, h * Dh:(h + 1) * Dh]
            kh = qkvb[:, D + h * Dh:D + (h + 1) * Dh]
            vh = qkvb[:, 2 * D + h * Dh:2 * D + (h + 1) * Dh]
            scores = lax.dot_general(qh, kh, (((1,), (1,)), ((), ())),
                                     preferred_element_type=jnp.float32)       # (S, S)
            scores = scores + bias_ref[h]
            m = jnp.max(scores, axis=-1, keepdims=True)
            e = jnp.exp(scores - m)
            inv = pl.reciprocal(jnp.sum(e, axis=-1, keepdims=True))            # exact, (S,1)
            probs = (e * inv).astype(jnp.bfloat16)
            return jnp.dot(probs, vh, preferred_element_type=jnp.float32)      # (S, Dh)

        # Per-head attention; context written in lane-aligned head-PAIR (128-lane at
        # BERT scale) chunks to a bf16 VMEM scratch. The output projection is done
        # ONCE per layer as a single full-contraction-depth matmul below.
        for hp in range(H // 2):
            c0 = head_ctx(2 * hp)
            c1 = head_ctx(2 * hp + 1)
            ctx_ref[:, hp * P:(hp + 1) * P] = (
                jnp.concatenate([c0, c1], axis=-1).astype(jnp.bfloat16))
        if H % 2:   # odd head count: single trailing head
            ctx_ref[:, (H - 1) * Dh:H * Dh] = head_ctx(H - 1).astype(jnp.bfloat16)

        attn = jnp.dot(ctx_ref[...], wo_ref[...],
                       preferred_element_type=jnp.float32) + bo_ref[0]          # (S, D)

        inter = _uer_layer_norm(attn + x, ln1g_ref[0], ln1b_ref[0])
        h1 = _gelu(jnp.dot(inter.astype(jnp.bfloat16), w1_ref[...],
                           preferred_element_type=jnp.float32) + b1_ref[0])
        ffn = jnp.dot(h1.astype(jnp.bfloat16), w2_ref[...],
                      preferred_element_type=jnp.float32) + b2_ref[0]
        return _uer_layer_norm(ffn + inter, ln2g_ref[0], ln2b_ref[0])

    # Shared-weight layer stack folded into the kernel: weights stay VMEM-resident
    # across layers and the hidden state never round-trips through HBM.
    out_ref[0] = lax.fori_loop(0, layers_num, layer, x0)


# ------------------------------ call construction -----------------------------

def _rep_spec(shape, single_buffer):
    n = len(shape)
    index_map = lambda b, _n=n: (0,) * _n
    if single_buffer:
        # Grid-invariant operand: DMA'd only once (constant block index), so a single
        # VMEM buffer suffices — halves its VMEM footprint vs. double-buffering.
        return pl.BlockSpec(shape, index_map, pipeline_mode=pl.Buffered(1))
    return pl.BlockSpec(shape, index_map)


def _vmem_limit_bytes():
    # Derive the scoped-VMEM budget from the actual chip instead of hard-coding:
    # v7x has only 64 MiB/TC (target ~48 MiB), v5e/v6e have 128 MiB (target 96 MiB).
    default_cap = 128 * 1024 * 1024
    try:
        cap = int(getattr(pltpu.get_tpu_info(), "vmem_capacity_bytes", default_cap))
    except Exception:
        # Hardware-info probe only; a conservative default never masks kernel errors.
        cap = default_cap
    return min((cap * 3) // 4, 112 * 1024 * 1024)


def _build_encoder_call(B, S, D, H, F, layers_num, single_buffer_invariants):
    rep = functools.partial(_rep_spec, single_buffer=single_buffer_invariants)
    in_specs = [
        pl.BlockSpec((1, S, D), lambda b: (b, 0, 0)),    # hidden (per-batch, pipelined)
        pl.BlockSpec((1, 1, S), lambda b: (b, 0, 0)),    # additive key-mask bias (B,1,S)
        rep((H, S, S)),                                  # rel-pos bias (bf16, pre-scaled)
        rep((D, 3 * D)), rep((1, 3 * D)),                # fused Wqkv, bqkv (Wq pre-scaled)
        rep((D, D)), rep((1, D)),                        # Wo, bo
        rep((1, D)), rep((1, D)),                        # ln1 gamma, beta
        rep((D, F)), rep((1, F)),                        # W1, b1
        rep((F, D)), rep((1, D)),                        # W2, b2
        rep((1, D)), rep((1, D)),                        # ln2 gamma, beta
    ]
    return pl.pallas_call(
        functools.partial(encoder_kernel, layers_num=layers_num),
        grid=(B,),
        in_specs=in_specs,
        out_specs=pl.BlockSpec((1, S, D), lambda b: (b, 0, 0)),
        out_shape=jax.ShapeDtypeStruct((B, S, D), jnp.float32),
        scratch_shapes=[
            pltpu.VMEM((H, S, S), jnp.float32),          # combined pos+mask bias
            pltpu.VMEM((S, D), jnp.bfloat16),            # per-layer attention context
        ],
        compiler_params=pltpu.CompilerParams(
            # Batch rows are independent -> shard grid across TensorCores (v7x megacore).
            # TODO(synk): second parallel grid axis over query tiles for v7x at B=1.
            dimension_semantics=("parallel",),
            vmem_limit_bytes=_vmem_limit_bytes(),
        ),
    )


# ------------------------ relative position bias (glue) -----------------------

def _relative_position_bucket(relative_position, bidirectional, num_buckets, max_distance):
    relative_buckets = jnp.zeros_like(relative_position)
    if bidirectional:
        num_buckets //= 2
        relative_buckets = relative_buckets + (relative_position > 0).astype(jnp.int32) * num_buckets
        relative_position = jnp.abs(relative_position)
    else:
        relative_position = -jnp.minimum(relative_position, 0)
    max_exact = num_buckets // 2
    is_small = relative_position < max_exact
    safe_rp = jnp.maximum(relative_position, 1)  # avoid log(0); masked by `is_small`
    rel_if_large = max_exact + (
        jnp.log(safe_rp.astype(jnp.float32) / max_exact)
        / math.log(max_distance / max_exact)
        * (num_buckets - max_exact)
    ).astype(jnp.int32)
    rel_if_large = jnp.minimum(rel_if_large, num_buckets - 1)
    return relative_buckets + jnp.where(is_small, relative_position, rel_if_large)


def relative_position_bias(rel_table, q_len, k_len, num_buckets, max_distance=128):
    context_position = jnp.arange(q_len, dtype=jnp.int32)[:, None]
    memory_position = jnp.arange(k_len, dtype=jnp.int32)[None, :]
    relative_position = memory_position - context_position                 # (q, k)
    buckets = _relative_position_bucket(relative_position, True, num_buckets, max_distance)
    values = rel_table[buckets]                                            # (q, k, H)
    return jnp.transpose(values, (2, 0, 1))                                # (H, q, k)


# ------------------------------- encoder wrapper ------------------------------

def transformer_encoder(emb, seg, params, layers_num, num_buckets):
    B, S, D = emb.shape
    H = params["rel_emb"].shape[1]
    F = params["w1"].shape[1]
    Dh = D // H
    scale = 1.0 / math.sqrt(float(Dh))

    # Additive key mask kept at (B, 1, S); broadcast to (S, S) in-kernel (once per
    # batch row, into the combined-bias scratch) instead of a (B, S, S) array in HBM.
    mask_bias = ((1.0 - (seg > 0).astype(jnp.float32)) * -10000.0)[:, None, :]

    # T5-style relative position bias, pre-divided by sqrt(Dh) (attention scale folded
    # out of the inner loops) and stored bf16 (halves its VMEM/HBM footprint).
    pos_bias = relative_position_bias(params["rel_emb"], S, S, num_buckets)      # (H,S,S)
    pos_bias = (pos_bias * scale).astype(jnp.bfloat16)

    # Fused QKV weight/bias; 1/sqrt(Dh) folded into Wq and bq BEFORE the bf16 cast.
    wqkv = jnp.concatenate([params["wq"] * scale, params["wk"], params["wv"]], axis=1)
    bqkv = jnp.concatenate([params["bq"] * scale, params["bk"], params["bv"]], axis=1)

    # One-time bf16 cast of the weight matrices (native MXU input dtype); biases and
    # LayerNorm parameters stay f32, accumulation inside the kernel stays f32.
    bf16 = lambda a: a.astype(jnp.bfloat16)
    operands = (
        emb.astype(jnp.float32), mask_bias, pos_bias,
        bf16(wqkv), bqkv.astype(jnp.float32),
        bf16(params["wo"]), params["bo"],
        params["ln1_g"], params["ln1_b"],
        bf16(params["w1"]), params["b1"],
        bf16(params["w2"]), params["b2"],
        params["ln2_g"], params["ln2_b"],
    )

    # Narrow capability guard for pipeline_mode=pl.Buffered(1) only: any unrelated
    # error re-surfaces identically on the fallback path; runtime errors (e.g. OOM,
    # XlaRuntimeError) are NOT caught and propagate.
    capability_errors = (TypeError, ValueError, NotImplementedError, pltpu.LoweringException)
    try:
        call = _build_encoder_call(B, S, D, H, F, layers_num, single_buffer_invariants=True)
        return call(*operands)
    except capability_errors:
        call = _build_encoder_call(B, S, D, H, F, layers_num, single_buffer_invariants=False)
        return call(*operands)


# ----------------------------------- main -------------------------------------

def _init_params(key, D, H, F, num_buckets):
    ks = jax.random.split(key, 10)
    n = lambda k, shape: 0.02 * jax.random.normal(k, shape, jnp.float32)
    return {
        "wq": n(ks[0], (D, D)), "bq": jnp.zeros((1, D), jnp.float32),
        "wk": n(ks[1], (D, D)), "bk": jnp.zeros((1, D), jnp.float32),
        "wv": n(ks[2], (D, D)), "bv": jnp.zeros((1, D), jnp.float32),
        "wo": n(ks[3], (D, D)), "bo": jnp.zeros((1, D), jnp.float32),
        "ln1_g": jnp.ones((1, D), jnp.float32), "ln1_b": jnp.zeros((1, D), jnp.float32),
        "w1": n(ks[4], (D, F)), "b1": jnp.zeros((1, F), jnp.float32),
        "w2": n(ks[5], (F, D)), "b2": jnp.zeros((1, D), jnp.float32),
        "ln2_g": jnp.ones((1, D), jnp.float32), "ln2_b": jnp.zeros((1, D), jnp.float32),
        "rel_emb": n(ks[6], (num_buckets, H)),
    }


if __name__ == "__main__":
    B, S, D, H, F = 2, 8, 32, 4, 64
    LAYERS_NUM = 2
    NUM_BUCKETS = 32

    key = jax.random.PRNGKey(0)
    k_param, k_emb = jax.random.split(key)
    params = _init_params(k_param, D, H, F, NUM_BUCKETS)

    emb = jax.random.normal(k_emb, (B, S, D), jnp.float32)
    seg = jnp.array([[1, 1, 1, 1, 1, 1, 0, 0],
                     [1, 1, 1, 1, 0, 0, 0, 0]], dtype=jnp.int32)

    out = transformer_encoder(emb, seg, params, layers_num=LAYERS_NUM, num_buckets=NUM_BUCKETS)
    out = jax.block_until_ready(out)
    assert out.shape == (B, S, D) and out.dtype == jnp.float32
    assert bool(jnp.all(jnp.isfinite(out)))
    print("KERNEL_OK")
</pallas_src>

<mosaic_0001>
module attributes {stable_mosaic.version = 11 : i64} {
  func.func @encoder_kernel(%arg0: i32, %arg1: memref<1x8x32xf32, #tpu.memory_space<vmem>>, %arg2: memref<1x1x8xf32, #tpu.memory_space<vmem>>, %arg3: memref<4x8x8xbf16, #tpu.memory_space<vmem>>, %arg4: memref<32x96xbf16, #tpu.memory_space<vmem>>, %arg5: memref<1x96xf32, #tpu.memory_space<vmem>>, %arg6: memref<32x32xbf16, #tpu.memory_space<vmem>>, %arg7: memref<1x32xf32, #tpu.memory_space<vmem>>, %arg8: memref<1x32xf32, #tpu.memory_space<vmem>>, %arg9: memref<1x32xf32, #tpu.memory_space<vmem>>, %arg10: memref<32x64xbf16, #tpu.memory_space<vmem>>, %arg11: memref<1x64xf32, #tpu.memory_space<vmem>>, %arg12: memref<64x32xbf16, #tpu.memory_space<vmem>>, %arg13: memref<1x32xf32, #tpu.memory_space<vmem>>, %arg14: memref<1x32xf32, #tpu.memory_space<vmem>>, %arg15: memref<1x32xf32, #tpu.memory_space<vmem>>, %arg16: memref<1x8x32xf32, #tpu.memory_space<vmem>>, %arg17: memref<4x8x8xf32, #tpu.memory_space<vmem>>, %arg18: memref<8x32xbf16, #tpu.memory_space<vmem>>) attributes {dimension_semantics = [#tpu.dimension_semantics<parallel>], iteration_bounds = array<i64: 2>, scalar_prefetch = 0 : i64, scratch_operands = 2 : i64, tpu.core_type = #tpu.core_type<tc>, window_params = [{transform_indices = @transform_0, window_bounds = array<i64: 1, 8, 32>}, {transform_indices = @transform_1, window_bounds = array<i64: 1, 1, 8>}, {pipeline_mode = #tpu.pipeline_mode<synchronous>, transform_indices = @transform_2, window_bounds = array<i64: 4, 8, 8>}, {pipeline_mode = #tpu.pipeline_mode<synchronous>, transform_indices = @transform_3, window_bounds = array<i64: 32, 96>}, {pipeline_mode = #tpu.pipeline_mode<synchronous>, transform_indices = @transform_4, window_bounds = array<i64: 1, 96>}, {pipeline_mode = #tpu.pipeline_mode<synchronous>, transform_indices = @transform_5, window_bounds = array<i64: 32, 32>}, {pipeline_mode = #tpu.pipeline_mode<synchronous>, transform_indices = @transform_6, window_bounds = array<i64: 1, 32>}, {pipeline_mode = #tpu.pipeline_mode<synchronous>, transform_indices = @transform_7, window_bounds = array<i64: 1, 32>}, {pipeline_mode = #tpu.pipeline_mode<synchronous>, transform_indices = @transform_8, window_bounds = array<i64: 1, 32>}, {pipeline_mode = #tpu.pipeline_mode<synchronous>, transform_indices = @transform_9, window_bounds = array<i64: 32, 64>}, {pipeline_mode = #tpu.pipeline_mode<synchronous>, transform_indices = @transform_10, window_bounds = array<i64: 1, 64>}, {pipeline_mode = #tpu.pipeline_mode<synchronous>, transform_indices = @transform_11, window_bounds = array<i64: 64, 32>}, {pipeline_mode = #tpu.pipeline_mode<synchronous>, transform_indices = @transform_12, window_bounds = array<i64: 1, 32>}, {pipeline_mode = #tpu.pipeline_mode<synchronous>, transform_indices = @transform_13, window_bounds = array<i64: 1, 32>}, {pipeline_mode = #tpu.pipeline_mode<synchronous>, transform_indices = @transform_14, window_bounds = array<i64: 1, 32>}, {transform_indices = @transform_15, window_bounds = array<i64: 1, 8, 32>}]} {
    %c0 = arith.constant 0 : index
    %c0_0 = arith.constant 0 : index
    %c0_1 = arith.constant 0 : index
    %0 = vector.load %arg1[%c0, %c0_0, %c0_1] : memref<1x8x32xf32, #tpu.memory_space<vmem>>, vector<1x8x32xf32>
    %1 = vector.shape_cast %0 : vector<1x8x32xf32> to vector<8x32xf32>
    %c0_2 = arith.constant 0 : index
    %c0_3 = arith.constant 0 : index
    %c0_4 = arith.constant 0 : index
    %2 = vector.load %arg3[%c0_2, %c0_3, %c0_4] : memref<4x8x8xbf16, #tpu.memory_space<vmem>>, vector<4x8x8xbf16>
    %3 = arith.extf %2 : vector<4x8x8xbf16> to vector<4x8x8xf32>
    %c0_5 = arith.constant 0 : index
    %c0_6 = arith.constant 0 : index
    %c0_7 = arith.constant 0 : index
    %4 = vector.load %arg2[%c0_5, %c0_6, %c0_7] : memref<1x1x8xf32, #tpu.memory_space<vmem>>, vector<1x1x8xf32>
    %5 = vector.broadcast %4 : vector<1x1x8xf32> to vector<4x8x8xf32>
    %6 = arith.addf %3, %5 : vector<4x8x8xf32>
    %c0_8 = arith.constant 0 : index
    %c0_9 = arith.constant 0 : index
    %c0_10 = arith.constant 0 : index
    %7 = vector.load %arg17[%c0_8, %c0_9, %c0_10] : memref<4x8x8xf32, #tpu.memory_space<vmem>>, vector<4x8x8xf32>
    tpu.vector_store %arg17[%c0_8, %c0_9, %c0_10], %6 {strides = array<i32>} : memref<4x8x8xf32, #tpu.memory_space<vmem>>, vector<4x8x8xf32>,
    %c0_i32 = arith.constant 0 : i32
    %c2_i32 = arith.constant 2 : i32
    %8 = arith.addi %c0_i32, %c2_i32 : i32
    %c1_i32 = arith.constant 1 : i32
    %9 = scf.for %arg19 = %c0_i32 to %8 step %c1_i32 iter_args(%arg20 = %1) -> (vector<8x32xf32>)  : i32 {
      %13 = arith.truncf %arg20 : vector<8x32xf32> to vector<8x32xbf16>
      %c0_14 = arith.constant 0 : index
      %c0_15 = arith.constant 0 : index
      %14 = vector.load %arg4[%c0_14, %c0_15] : memref<32x96xbf16, #tpu.memory_space<vmem>>, vector<32x96xbf16>
      %cst = arith.constant dense<0.000000e+00> : vector<8x96xf32>
      %15 = tpu.matmul %13, %14, %cst {dimension_numbers = #tpu.dot_dimension_numbers<[1], [0], [0], [1], [0, 0, 1, 1], [], []>} : vector<8x32xbf16>, vector<32x96xbf16>, vector<8x96xf32> -> vector<8x96xf32>
      %c0_16 = arith.constant 0 : index
      %c0_17 = arith.constant 0 : index
      %16 = vector.load %arg5[%c0_16, %c0_17] : memref<1x96xf32, #tpu.memory_space<vmem>>, vector<1x96xf32>
      %17 = vector.shape_cast %16 : vector<1x96xf32> to vector<96xf32>
      %18 = vector.shape_cast %17 : vector<96xf32> to vector<1x96xf32>
      %19 = vector.broadcast %18 : vector<1x96xf32> to vector<8x96xf32>
      %20 = arith.addf %15, %19 : vector<8x96xf32>
      %21 = arith.truncf %20 : vector<8x96xf32> to vector<8x96xbf16>
      %22 = vector.extract_strided_slice %21 {offsets = [0, 0], sizes = [8, 8], strides = [1, 1]} : vector<8x96xbf16> to vector<8x8xbf16>
      %23 = vector.extract_strided_slice %21 {offsets = [0, 32], sizes = [8, 8], strides = [1, 1]} : vector<8x96xbf16> to vector<8x8xbf16>
      %24 = vector.extract_strided_slice %21 {offsets = [0, 64], sizes = [8, 8], strides = [1, 1]} : vector<8x96xbf16> to vector<8x8xbf16>
      %cst_18 = arith.constant dense<0.000000e+00> : vector<8x8xf32>
      %25 = tpu.matmul %22, %23, %cst_18 {dimension_numbers = #tpu.dot_dimension_numbers<[1], [1], [0], [0], [0, 0, 1, 0], [], []>} : vector<8x8xbf16>, vector<8x8xbf16>, vector<8x8xf32> -> vector<8x8xf32>
      %c0_19 = arith.constant 0 : index
      %c0_20 = arith.constant 0 : index
      %c0_21 = arith.constant 0 : index
      %26 = vector.load %arg17[%c0_19, %c0_20, %c0_21] : memref<4x8x8xf32, #tpu.memory_space<vmem>>, vector<1x8x8xf32>
      %27 = vector.shape_cast %26 : vector<1x8x8xf32> to vector<8x8xf32>
      %28 = arith.addf %25, %27 : vector<8x8xf32>
      %cst_22 = arith.constant dense<0xFF800000> : vector<8xf32>
      %29 = vector.multi_reduction <maximumf>, %28, %cst_22 [1] : vector<8x8xf32> to vector<8xf32>
      %30 = vector.shape_cast %29 : vector<8xf32> to vector<8x1xf32>
      %31 = vector.broadcast %30 : vector<8x1xf32> to vector<8x8xf32>
      %32 = arith.subf %28, %31 : vector<8x8xf32>
      %33 = math.exp %32 : vector<8x8xf32>
      %cst_23 = arith.constant dense<0.000000e+00> : vector<8xf32>
      %34 = vector.multi_reduction <add>, %33, %cst_23 [1] : vector<8x8xf32> to vector<8xf32>
      %35 = vector.shape_cast %34 : vector<8xf32> to vector<8x1xf32>
      %36 = tpu.reciprocal %35 : vector<8x1xf32> -> vector<8x1xf32>
      %37 = vector.broadcast %36 : vector<8x1xf32> to vector<8x8xf32>
      %38 = arith.mulf %33, %37 : vector<8x8xf32>
      %39 = arith.truncf %38 : vector<8x8xf32> to vector<8x8xbf16>
      %cst_24 = arith.constant dense<0.000000e+00> : vector<8x8xf32>
      %40 = tpu.matmul %39, %24, %cst_24 {dimension_numbers = #tpu.dot_dimension_numbers<[1], [0], [0], [1], [0, 0, 1, 1], [], []>} : vector<8x8xbf16>, vector<8x8xbf16>, vector<8x8xf32> -> vector<8x8xf32>
      %41 = vector.extract_strided_slice %21 {offsets = [0, 8], sizes = [8, 8], strides = [1, 1]} : vector<8x96xbf16> to vector<8x8xbf16>
      %42 = vector.extract_strided_slice %21 {offsets = [0, 40], sizes = [8, 8], strides = [1, 1]} : vector<8x96xbf16> to vector<8x8xbf16>
      %43 = vector.extract_strided_slice %21 {offsets = [0, 72], sizes = [8, 8], strides = [1, 1]} : vector<8x96xbf16> to vector<8x8xbf16>
      %cst_25 = arith.constant dense<0.000000e+00> : vector<8x8xf32>
      %44 = tpu.matmul %41, %42, %cst_25 {dimension_numbers = #tpu.dot_dimension_numbers<[1], [1], [0], [0], [0, 0, 1, 0], [], []>} : vector<8x8xbf16>, vector<8x8xbf16>, vector<8x8xf32> -> vector<8x8xf32>
      %c1 = arith.constant 1 : index
      %c0_26 = arith.constant 0 : index
      %c0_27 = arith.constant 0 : index
      %45 = vector.load %arg17[%c1, %c0_26, %c0_27] : memref<4x8x8xf32, #tpu.memory_space<vmem>>, vector<1x8x8xf32>
      %46 = vector.shape_cast %45 : vector<1x8x8xf32> to vector<8x8xf32>
      %47 = arith.addf %44, %46 : vector<8x8xf32>
      %cst_28 = arith.constant dense<0xFF800000> : vector<8xf32>
      %48 = vector.multi_reduction <maximumf>, %47, %cst_28 [1] : vector<8x8xf32> to vector<8xf32>
      %49 = vector.shape_cast %48 : vector<8xf32> to vector<8x1xf32>
      %50 = vector.broadcast %49 : vector<8x1xf32> to vector<8x8xf32>
      %51 = arith.subf %47, %50 : vector<8x8xf32>
      %52 = math.exp %51 : vector<8x8xf32>
      %cst_29 = arith.constant dense<0.000000e+00> : vector<8xf32>
      %53 = vector.multi_reduction <add>, %52, %cst_29 [1] : vector<8x8xf32> to vector<8xf32>
      %54 = vector.shape_cast %53 : vector<8xf32> to vector<8x1xf32>
      %55 = tpu.reciprocal %54 : vector<8x1xf32> -> vector<8x1xf32>
      %56 = vector.broadcast %55 : vector<8x1xf32> to vector<8x8xf32>
      %57 = arith.mulf %52, %56 : vector<8x8xf32>
      %58 = arith.truncf %57 : vector<8x8xf32> to vector<8x8xbf16>
      %cst_30 = arith.constant dense<0.000000e+00> : vector<8x8xf32>
      %59 = tpu.matmul %58, %43, %cst_30 {dimension_numbers = #tpu.dot_dimension_numbers<[1], [0], [0], [1], [0, 0, 1, 1], [], []>} : vector<8x8xbf16>, vector<8x8xbf16>, vector<8x8xf32> -> vector<8x8xf32>
      %60 = tpu.concatenate %40, %59 in 1 : vector<8x8xf32>, vector<8x8xf32> -> vector<8x16xf32>
      %61 = arith.truncf %60 : vector<8x16xf32> to vector<8x16xbf16>
      %c0_31 = arith.constant 0 : index
      %c0_32 = arith.constant 0 : index
      %62 = vector.load %arg18[%c0_31, %c0_32] : memref<8x32xbf16, #tpu.memory_space<vmem>>, vector<8x16xbf16>
      tpu.vector_store %arg18[%c0_31, %c0_32], %61 {strides = array<i32>} : memref<8x32xbf16, #tpu.memory_space<vmem>>, vector<8x16xbf16>,
      %63 = vector.extract_strided_slice %21 {offsets = [0, 16], sizes = [8, 8], strides = [1, 1]} : vector<8x96xbf16> to vector<8x8xbf16>
      %64 = vector.extract_strided_slice %21 {offsets = [0, 48], sizes = [8, 8], strides = [1, 1]} : vector<8x96xbf16> to vector<8x8xbf16>
      %65 = vector.extract_strided_slice %21 {offsets = [0, 80], sizes = [8, 8], strides = [1, 1]} : vector<8x96xbf16> to vector<8x8xbf16>
      %cst_33 = arith.constant dense<0.000000e+00> : vector<8x8xf32>
      %66 = tpu.matmul %63, %64, %cst_33 {dimension_numbers = #tpu.dot_dimension_numbers<[1], [1], [0], [0], [0, 0, 1, 0], [], []>} : vector<8x8xbf16>, vector<8x8xbf16>, vector<8x8xf32> -> vector<8x8xf32>
      %c2 = arith.constant 2 : index
      %c0_34 = arith.constant 0 : index
      %c0_35 = arith.constant 0 : index
      %67 = vector.load %arg17[%c2, %c0_34, %c0_35] : memref<4x8x8xf32, #tpu.memory_space<vmem>>, vector<1x8x8xf32>
      %68 = vector.shape_cast %67 : vector<1x8x8xf32> to vector<8x8xf32>
      %69 = arith.addf %66, %68 : vector<8x8xf32>
      %cst_36 = arith.constant dense<0xFF800000> : vector<8xf32>
      %70 = vector.multi_reduction <maximumf>, %69, %cst_36 [1] : vector<8x8xf32> to vector<8xf32>
      %71 = vector.shape_cast %70 : vector<8xf32> to vector<8x1xf32>
      %72 = vector.broadcast %71 : vector<8x1xf32> to vector<8x8xf32>
      %73 = arith.subf %69, %72 : vector<8x8xf32>
      %74 = math.exp %73 : vector<8x8xf32>
      %cst_37 = arith.constant dense<0.000000e+00> : vector<8xf32>
      %75 = vector.multi_reduction <add>, %74, %cst_37 [1] : vector<8x8xf32> to vector<8xf32>
      %76 = vector.shape_cast %75 : vector<8xf32> to vector<8x1xf32>
      %77 = tpu.reciprocal %76 : vector<8x1xf32> -> vector<8x1xf32>
      %78 = vector.broadcast %77 : vector<8x1xf32> to vector<8x8xf32>
      %79 = arith.mulf %74, %78 : vector<8x8xf32>
      %80 = arith.truncf %79 : vector<8x8xf32> to vector<8x8xbf16>
      %cst_38 = arith.constant dense<0.000000e+00> : vector<8x8xf32>
      %81 = tpu.matmul %80, %65, %cst_38 {dimension_numbers = #tpu.dot_dimension_numbers<[1], [0], [0], [1], [0, 0, 1, 1], [], []>} : vector<8x8xbf16>, vector<8x8xbf16>, vector<8x8xf32> -> vector<8x8xf32>
      %82 = vector.extract_strided_slice %21 {offsets = [0, 24], sizes = [8, 8], strides = [1, 1]} : vector<8x96xbf16> to vector<8x8xbf16>
      %83 = vector.extract_strided_slice %21 {offsets = [0, 56], sizes = [8, 8], strides = [1, 1]} : vector<8x96xbf16> to vector<8x8xbf16>
      %84 = vector.extract_strided_slice %21 {offsets = [0, 88], sizes = [8, 8], strides = [1, 1]} : vector<8x96xbf16> to vector<8x8xbf16>
      %cst_39 = arith.constant dense<0.000000e+00> : vector<8x8xf32>
      %85 = tpu.matmul %82, %83, %cst_39 {dimension_numbers = #tpu.dot_dimension_numbers<[1], [1], [0], [0], [0, 0, 1, 0], [], []>} : vector<8x8xbf16>, vector<8x8xbf16>, vector<8x8xf32> -> vector<8x8xf32>
      %c3 = arith.constant 3 : index
      %c0_40 = arith.constant 0 : index
      %c0_41 = arith.constant 0 : index
      %86 = vector.load %arg17[%c3, %c0_40, %c0_41] : memref<4x8x8xf32, #tpu.memory_space<vmem>>, vector<1x8x8xf32>
      %87 = vector.shape_cast %86 : vector<1x8x8xf32> to vector<8x8xf32>
      %88 = arith.addf %85, %87 : vector<8x8xf32>
      %cst_42 = arith.constant dense<0xFF800000> : vector<8xf32>
      %89 = vector.multi_reduction <maximumf>, %88, %cst_42 [1] : vector<8x8xf32> to vector<8xf32>
      %90 = vector.shape_cast %89 : vector<8xf32> to vector<8x1xf32>
      %91 = vector.broadcast %90 : vector<8x1xf32> to vector<8x8xf32>
      %92 = arith.subf %88, %91 : vector<8x8xf32>
      %93 = math.exp %92 : vector<8x8xf32>
      %cst_43 = arith.constant dense<0.000000e+00> : vector<8xf32>
      %94 = vector.multi_reduction <add>, %93, %cst_43 [1] : vector<8x8xf32> to vector<8xf32>
      %95 = vector.shape_cast %94 : vector<8xf32> to vector<8x1xf32>
      %96 = tpu.reciprocal %95 : vector<8x1xf32> -> vector<8x1xf32>
      %97 = vector.broadcast %96 : vector<8x1xf32> to vector<8x8xf32>
      %98 = arith.mulf %93, %97 : vector<8x8xf32>
      %99 = arith.truncf %98 : vector<8x8xf32> to vector<8x8xbf16>
      %cst_44 = arith.constant dense<0.000000e+00> : vector<8x8xf32>
      %100 = tpu.matmul %99, %84, %cst_44 {dimension_numbers = #tpu.dot_dimension_numbers<[1], [0], [0], [1], [0, 0, 1, 1], [], []>} : vector<8x8xbf16>, vector<8x8xbf16>, vector<8x8xf32> -> vector<8x8xf32>
      %101 = tpu.concatenate %81, %100 in 1 : vector<8x8xf32>, vector<8x8xf32> -> vector<8x16xf32>
      %102 = arith.truncf %101 : vector<8x16xf32> to vector<8x16xbf16>
      %c0_45 = arith.constant 0 : index
      %c16 = arith.constant 16 : index
      %103 = vector.load %arg18[%c0_45, %c16] : memref<8x32xbf16, #tpu.memory_space<vmem>>, vector<8x16xbf16>
      tpu.vector_store %arg18[%c0_45, %c16], %102 {strides = array<i32>} : memref<8x32xbf16, #tpu.memory_space<vmem>>, vector<8x16xbf16>,
      %c0_46 = arith.constant 0 : index
      %c0_47 = arith.constant 0 : index
      %104 = vector.load %arg18[%c0_46, %c0_47] : memref<8x32xbf16, #tpu.memory_space<vmem>>, vector<8x32xbf16>
      %c0_48 = arith.constant 0 : index
      %c0_49 = arith.constant 0 : index
      %105 = vector.load %arg6[%c0_48, %c0_49] : memref<32x32xbf16, #tpu.memory_space<vmem>>, vector<32x32xbf16>
      %cst_50 = arith.constant dense<0.000000e+00> : vector<8x32xf32>
      %106 = tpu.matmul %104, %105, %cst_50 {dimension_numbers = #tpu.dot_dimension_numbers<[1], [0], [0], [1], [0, 0, 1, 1], [], []>} : vector<8x32xbf16>, vector<32x32xbf16>, vector<8x32xf32> -> vector<8x32xf32>
      %c0_51 = arith.constant 0 : index
      %c0_52 = arith.constant 0 : index
      %107 = vector.load %arg7[%c0_51, %c0_52] : memref<1x32xf32, #tpu.memory_space<vmem>>, vector<1x32xf32>
      %108 = vector.shape_cast %107 : vector<1x32xf32> to vector<32xf32>
      %109 = vector.shape_cast %108 : vector<32xf32> to vector<1x32xf32>
      %110 = vector.broadcast %109 : vector<1x32xf32> to vector<8x32xf32>
      %111 = arith.addf %106, %110 : vector<8x32xf32>
      %112 = arith.addf %111, %arg20 : vector<8x32xf32>
      %c0_53 = arith.constant 0 : index
      %c0_54 = arith.constant 0 : index
      %113 = vector.load %arg8[%c0_53, %c0_54] : memref<1x32xf32, #tpu.memory_space<vmem>>, vector<1x32xf32>
      %114 = vector.shape_cast %113 : vector<1x32xf32> to vector<32xf32>
      %c0_55 = arith.constant 0 : index
      %c0_56 = arith.constant 0 : index
      %115 = vector.load %arg9[%c0_55, %c0_56] : memref<1x32xf32, #tpu.memory_space<vmem>>, vector<1x32xf32>
      %116 = vector.shape_cast %115 : vector<1x32xf32> to vector<32xf32>
      %cst_57 = arith.constant dense<0.000000e+00> : vector<8xf32>
      %117 = vector.multi_reduction <add>, %112, %cst_57 [1] : vector<8x32xf32> to vector<8xf32>
      %118 = vector.shape_cast %117 : vector<8xf32> to vector<8x1xf32>
      %cst_58 = arith.constant 3.200000e+01 : f32
      %119 = vector.broadcast %cst_58 : f32 to vector<8x1xf32>
      %120 = arith.divf %118, %119 : vector<8x1xf32>
      %121 = vector.broadcast %120 : vector<8x1xf32> to vector<8x32xf32>
      %122 = arith.subf %112, %121 : vector<8x32xf32>
      %123 = arith.mulf %122, %122 : vector<8x32xf32>
      %cst_59 = arith.constant dense<0.000000e+00> : vector<8xf32>
      %124 = vector.multi_reduction <add>, %123, %cst_59 [1] : vector<8x32xf32> to vector<8xf32>
      %125 = vector.shape_cast %124 : vector<8xf32> to vector<8x1xf32>
      %cst_60 = arith.constant 0.0322580636 : f32
      %126 = vector.broadcast %cst_60 : f32 to vector<8x1xf32>
      %127 = arith.mulf %125, %126 : vector<8x1xf32>
      %128 = math.sqrt %127 : vector<8x1xf32>
      %cst_61 = arith.constant 9.99999997E-7 : f32
      %129 = vector.broadcast %cst_61 : f32 to vector<8x1xf32>
      %130 = arith.addf %128, %129 : vector<8x1xf32>
      %131 = tpu.reciprocal %130 : vector<8x1xf32> -> vector<8x1xf32>
      %132 = vector.broadcast %131 : vector<8x1xf32> to vector<8x32xf32>
      %133 = arith.mulf %122, %132 : vector<8x32xf32>
      %134 = vector.shape_cast %114 : vector<32xf32> to vector<1x32xf32>
      %135 = vector.broadcast %134 : vector<1x32xf32> to vector<8x32xf32>
      %136 = arith.mulf %133, %135 : vector<8x32xf32>
      %137 = vector.shape_cast %116 : vector<32xf32> to vector<1x32xf32>
      %138 = vector.broadcast %137 : vector<1x32xf32> to vector<8x32xf32>
      %139 = arith.addf %136, %138 : vector<8x32xf32>
      %140 = arith.truncf %139 : vector<8x32xf32> to vector<8x32xbf16>
      %c0_62 = arith.constant 0 : index
      %c0_63 = arith.constant 0 : index
      %141 = vector.load %arg10[%c0_62, %c0_63] : memref<32x64xbf16, #tpu.memory_space<vmem>>, vector<32x64xbf16>
      %cst_64 = arith.constant dense<0.000000e+00> : vector<8x64xf32>
      %142 = tpu.matmul %140, %141, %cst_64 {dimension_numbers = #tpu.dot_dimension_numbers<[1], [0], [0], [1], [0, 0, 1, 1], [], []>} : vector<8x32xbf16>, vector<32x64xbf16>, vector<8x64xf32> -> vector<8x64xf32>
      %c0_65 = arith.constant 0 : index
      %c0_66 = arith.constant 0 : index
      %143 = vector.load %arg11[%c0_65, %c0_66] : memref<1x64xf32, #tpu.memory_space<vmem>>, vector<1x64xf32>
      %144 = vector.shape_cast %143 : vector<1x64xf32> to vector<64xf32>
      %145 = vector.shape_cast %144 : vector<64xf32> to vector<1x64xf32>
      %146 = vector.broadcast %145 : vector<1x64xf32> to vector<8x64xf32>
      %147 = arith.addf %142, %146 : vector<8x64xf32>
      %cst_67 = arith.constant 5.000000e-01 : f32
      %148 = vector.broadcast %cst_67 : f32 to vector<8x64xf32>
      %149 = arith.mulf %147, %148 : vector<8x64xf32>
      %cst_68 = arith.constant 0.707106769 : f32
      %150 = vector.broadcast %cst_68 : f32 to vector<8x64xf32>
      %151 = arith.mulf %147, %150 : vector<8x64xf32>
      %152 = math.absf %151 : vector<8x64xf32>
      %cst_69 = arith.constant 0.327591091 : f32
      %153 = vector.broadcast %cst_69 : f32 to vector<8x64xf32>
      %154 = arith.mulf %153, %152 : vector<8x64xf32>
      %cst_70 = arith.constant 1.000000e+00 : f32
      %155 = vector.broadcast %cst_70 : f32 to vector<8x64xf32>
      %156 = arith.addf %155, %154 : vector<8x64xf32>
      %157 = tpu.reciprocal %156 {approx = true} : vector<8x64xf32> -> vector<8x64xf32>
      %cst_71 = arith.constant 1.06140542 : f32
      %158 = vector.broadcast %cst_71 : f32 to vector<8x64xf32>
      %159 = arith.mulf %158, %157 : vector<8x64xf32>
      %cst_72 = arith.constant -1.45315206 : f32
      %160 = vector.broadcast %cst_72 : f32 to vector<8x64xf32>
      %161 = arith.addf %159, %160 : vector<8x64xf32>
      %162 = arith.mulf %161, %157 : vector<8x64xf32>
      %cst_73 = arith.constant 1.42141378 : f32
      %163 = vector.broadcast %cst_73 : f32 to vector<8x64xf32>
      %164 = arith.addf %162, %163 : vector<8x64xf32>
      %165 = arith.mulf %164, %157 : vector<8x64xf32>
      %cst_74 = arith.constant -0.284496725 : f32
      %166 = vector.broadcast %cst_74 : f32 to vector<8x64xf32>
      %167 = arith.addf %165, %166 : vector<8x64xf32>
      %168 = arith.mulf %167, %157 : vector<8x64xf32>
      %cst_75 = arith.constant 0.254829586 : f32
      %169 = vector.broadcast %cst_75 : f32 to vector<8x64xf32>
      %170 = arith.addf %168, %169 : vector<8x64xf32>
      %171 = arith.mulf %170, %157 : vector<8x64xf32>
      %cst_76 = arith.constant 0.000000e+00 : f32
      %172 = vector.broadcast %cst_76 : f32 to vector<8x64xf32>
      %173 = arith.subf %172, %152 : vector<8x64xf32>
      %174 = arith.mulf %173, %152 : vector<8x64xf32>
      %175 = math.exp %174 : vector<8x64xf32>
      %176 = arith.mulf %171, %175 : vector<8x64xf32>
      %cst_77 = arith.constant 1.000000e+00 : f32
      %177 = vector.broadcast %cst_77 : f32 to vector<8x64xf32>
      %178 = arith.subf %177, %176 : vector<8x64xf32>
      %cst_78 = arith.constant 0.000000e+00 : f32
      %179 = vector.broadcast %cst_78 : f32 to vector<8x64xf32>
      %180 = arith.cmpf olt, %151, %179 : vector<8x64xf32>
      %cst_79 = arith.constant 0.000000e+00 : f32
      %181 = vector.broadcast %cst_79 : f32 to vector<8x64xf32>
      %182 = arith.subf %181, %178 : vector<8x64xf32>
      %183 = arith.select %180, %182, %178 : vector<8x64xi1>, vector<8x64xf32>
      %cst_80 = arith.constant 1.000000e+00 : f32
      %184 = vector.broadcast %cst_80 : f32 to vector<8x64xf32>
      %185 = arith.addf %184, %183 : vector<8x64xf32>
      %186 = arith.mulf %149, %185 : vector<8x64xf32>
      %187 = arith.truncf %186 : vector<8x64xf32> to vector<8x64xbf16>
      %c0_81 = arith.constant 0 : index
      %c0_82 = arith.constant 0 : index
      %188 = vector.load %arg12[%c0_81, %c0_82] : memref<64x32xbf16, #tpu.memory_space<vmem>>, vector<64x32xbf16>
      %cst_83 = arith.constant dense<0.000000e+00> : vector<8x32xf32>
      %189 = tpu.matmul %187, %188, %cst_83 {dimension_numbers = #tpu.dot_dimension_numbers<[1], [0], [0], [1], [0, 0, 1, 1], [], []>} : vector<8x64xbf16>, vector<64x32xbf16>, vector<8x32xf32> -> vector<8x32xf32>
      %c0_84 = arith.constant 0 : index
      %c0_85 = arith.constant 0 : index
      %190 = vector.load %arg13[%c0_84, %c0_85] : memref<1x32xf32, #tpu.memory_space<vmem>>, vector<1x32xf32>
      %191 = vector.shape_cast %190 : vector<1x32xf32> to vector<32xf32>
      %192 = vector.shape_cast %191 : vector<32xf32> to vector<1x32xf32>
      %193 = vector.broadcast %192 : vector<1x32xf32> to vector<8x32xf32>
      %194 = arith.addf %189, %193 : vector<8x32xf32>
      %195 = arith.addf %194, %139 : vector<8x32xf32>
      %c0_86 = arith.constant 0 : index
      %c0_87 = arith.constant 0 : index
      %196 = vector.load %arg14[%c0_86, %c0_87] : memref<1x32xf32, #tpu.memory_space<vmem>>, vector<1x32xf32>
      %197 = vector.shape_cast %196 : vector<1x32xf32> to vector<32xf32>
      %c0_88 = arith.constant 0 : index
      %c0_89 = arith.constant 0 : index
      %198 = vector.load %arg15[%c0_88, %c0_89] : memref<1x32xf32, #tpu.memory_space<vmem>>, vector<1x32xf32>
      %199 = vector.shape_cast %198 : vector<1x32xf32> to vector<32xf32>
      %cst_90 = arith.constant dense<0.000000e+00> : vector<8xf32>
      %200 = vector.multi_reduction <add>, %195, %cst_90 [1] : vector<8x32xf32> to vector<8xf32>
      %201 = vector.shape_cast %200 : vector<8xf32> to vector<8x1xf32>
      %cst_91 = arith.constant 3.200000e+01 : f32
      %202 = vector.broadcast %cst_91 : f32 to vector<8x1xf32>
      %203 = arith.divf %201, %202 : vector<8x1xf32>
      %204 = vector.broadcast %203 : vector<8x1xf32> to vector<8x32xf32>
      %205 = arith.subf %195, %204 : vector<8x32xf32>
      %206 = arith.mulf %205, %205 : vector<8x32xf32>
      %cst_92 = arith.constant dense<0.000000e+00> : vector<8xf32>
      %207 = vector.multi_reduction <add>, %206, %cst_92 [1] : vector<8x32xf32> to vector<8xf32>
      %208 = vector.shape_cast %207 : vector<8xf32> to vector<8x1xf32>
      %cst_93 = arith.constant 0.0322580636 : f32
      %209 = vector.broadcast %cst_93 : f32 to vector<8x1xf32>
      %210 = arith.mulf %208, %209 : vector<8x1xf32>
      %211 = math.sqrt %210 : vector<8x1xf32>
      %cst_94 = arith.constant 9.99999997E-7 : f32
      %212 = vector.broadcast %cst_94 : f32 to vector<8x1xf32>
      %213 = arith.addf %211, %212 : vector<8x1xf32>
      %214 = tpu.reciprocal %213 : vector<8x1xf32> -> vector<8x1xf32>
      %215 = vector.broadcast %214 : vector<8x1xf32> to vector<8x32xf32>
      %216 = arith.mulf %205, %215 : vector<8x32xf32>
      %217 = vector.shape_cast %197 : vector<32xf32> to vector<1x32xf32>
      %218 = vector.broadcast %217 : vector<1x32xf32> to vector<8x32xf32>
      %219 = arith.mulf %216, %218 : vector<8x32xf32>
      %220 = vector.shape_cast %199 : vector<32xf32> to vector<1x32xf32>
      %221 = vector.broadcast %220 : vector<1x32xf32> to vector<8x32xf32>
      %222 = arith.addf %219, %221 : vector<8x32xf32>
      scf.yield %222 : vector<8x32xf32>
    }
    %c0_11 = arith.constant 0 : index
    %c0_12 = arith.constant 0 : index
    %c0_13 = arith.constant 0 : index
    %10 = vector.load %arg16[%c0_11, %c0_12, %c0_13] : memref<1x8x32xf32, #tpu.memory_space<vmem>>, vector<1x8x32xf32>
    %11 = vector.shape_cast %10 : vector<1x8x32xf32> to vector<8x32xf32>
    %12 = vector.shape_cast %9 : vector<8x32xf32> to vector<1x8x32xf32>
    tpu.vector_store %arg16[%c0_11, %c0_12, %c0_13], %12 {strides = array<i32>} : memref<1x8x32xf32, #tpu.memory_space<vmem>>, vector<1x8x32xf32>,
    return
  }
  func.func @transform_0(%arg0: i32) -> (i32, i32, i32) {
    %c0_i32 = arith.constant 0 : i32
    %c0_i32_0 = arith.constant 0 : i32
    %c0_i32_1 = arith.constant 0 : i32
    return %arg0, %c0_i32, %c0_i32_0 : i32, i32, i32
  }
  func.func @transform_1(%arg0: i32) -> (i32, i32, i32) {
    %c0_i32 = arith.constant 0 : i32
    %c0_i32_0 = arith.constant 0 : i32
    %c0_i32_1 = arith.constant 0 : i32
    return %arg0, %c0_i32, %c0_i32_0 : i32, i32, i32
  }
  func.func @transform_2(%arg0: i32) -> (i32, i32, i32) {
    %c0_i32 = arith.constant 0 : i32
    %c0_i32_0 = arith.constant 0 : i32
    %c0_i32_1 = arith.constant 0 : i32
    %c0_i32_2 = arith.constant 0 : i32
    return %c0_i32, %c0_i32_0, %c0_i32_1 : i32, i32, i32
  }
  func.func @transform_3(%arg0: i32) -> (i32, i32) {
    %c0_i32 = arith.constant 0 : i32
    %c0_i32_0 = arith.constant 0 : i32
    %c0_i32_1 = arith.constant 0 : i32
    return %c0_i32, %c0_i32_0 : i32, i32
  }
  func.func @transform_4(%arg0: i32) -> (i32, i32) {
    %c0_i32 = arith.constant 0 : i32
    %c0_i32_0 = arith.constant 0 : i32
    %c0_i32_1 = arith.constant 0 : i32
    return %c0_i32, %c0_i32_0 : i32, i32
  }
  func.func @transform_5(%arg0: i32) -> (i32, i32) {
    %c0_i32 = arith.constant 0 : i32
    %c0_i32_0 = arith.constant 0 : i32
    %c0_i32_1 = arith.constant 0 : i32
    return %c0_i32, %c0_i32_0 : i32, i32
  }
  func.func @transform_6(%arg0: i32) -> (i32, i32) {
    %c0_i32 = arith.constant 0 : i32
    %c0_i32_0 = arith.constant 0 : i32
    %c0_i32_1 = arith.constant 0 : i32
    return %c0_i32, %c0_i32_0 : i32, i32
  }
  func.func @transform_7(%arg0: i32) -> (i32, i32) {
    %c0_i32 = arith.constant 0 : i32
    %c0_i32_0 = arith.constant 0 : i32
    %c0_i32_1 = arith.constant 0 : i32
    return %c0_i32, %c0_i32_0 : i32, i32
  }
  func.func @transform_8(%arg0: i32) -> (i32, i32) {
    %c0_i32 = arith.constant 0 : i32
    %c0_i32_0 = arith.constant 0 : i32
    %c0_i32_1 = arith.constant 0 : i32
    return %c0_i32, %c0_i32_0 : i32, i32
  }
  func.func @transform_9(%arg0: i32) -> (i32, i32) {
    %c0_i32 = arith.constant 0 : i32
    %c0_i32_0 = arith.constant 0 : i32
    %c0_i32_1 = arith.constant 0 : i32
    return %c0_i32, %c0_i32_0 : i32, i32
  }
  func.func @transform_10(%arg0: i32) -> (i32, i32) {
    %c0_i32 = arith.constant 0 : i32
    %c0_i32_0 = arith.constant 0 : i32
    %c0_i32_1 = arith.constant 0 : i32
    return %c0_i32, %c0_i32_0 : i32, i32
  }
  func.func @transform_11(%arg0: i32) -> (i32, i32) {
    %c0_i32 = arith.constant 0 : i32
    %c0_i32_0 = arith.constant 0 : i32
    %c0_i32_1 = arith.constant 0 : i32
    return %c0_i32, %c0_i32_0 : i32, i32
  }
  func.func @transform_12(%arg0: i32) -> (i32, i32) {
    %c0_i32 = arith.constant 0 : i32
    %c0_i32_0 = arith.constant 0 : i32
    %c0_i32_1 = arith.constant 0 : i32
    return %c0_i32, %c0_i32_0 : i32, i32
  }
  func.func @transform_13(%arg0: i32) -> (i32, i32) {
    %c0_i32 = arith.constant 0 : i32
    %c0_i32_0 = arith.constant 0 : i32
    %c0_i32_1 = arith.constant 0 : i32
    return %c0_i32, %c0_i32_0 : i32, i32
  }
  func.func @transform_14(%arg0: i32) -> (i32, i32) {
    %c0_i32 = arith.constant 0 : i32
    %c0_i32_0 = arith.constant 0 : i32
    %c0_i32_1 = arith.constant 0 : i32
    return %c0_i32, %c0_i32_0 : i32, i32
  }
  func.func @transform_15(%arg0: i32) -> (i32, i32, i32) {
    %c0_i32 = arith.constant 0 : i32
    %c0_i32_0 = arith.constant 0 : i32
    %c0_i32_1 = arith.constant 0 : i32
    return %arg0, %c0_i32, %c0_i32_0 : i32, i32, i32
  }
}

</mosaic_0001>

<llo_original>
// kernel: tpu_custom_call.1
$region0: #{tpu_custom_call.1}
  #allocation0 [shape = 'u32[]', space=smem, size = 0x4, offset = 0x4, fixed_abs, tag = 'smem constant byte address 0x4 - core index']
  #allocation1 [shape = 'u32[144,128]{1,0:T(1,128)}', space=vmem, size = 0x12000, scoped, tag = 'internal scratch']
  #allocation2 [shape = 'f32[4,8,8]{2,1,0:T(8,128)}', space=vmem, size = 0x4000, scoped, tag = 'scratch operand']
  #allocation3 [shape = 'bf16[8,32]{1,0:T(8,128)(2,1)}', space=vmem, size = 0x800, scoped, tag = 'scratch operand']
  %s0 = inlined_call_operand.vmem [shape: f32[2,8,32], index: 0, kind: input, shape index: {}]
  %s1 = inlined_call_operand.hbm [shape: f32[2,1,8], index: 1, kind: input, shape index: {}]
  %s2 = inlined_call_operand.vmem [shape: bf16[4,8,8], index: 2, kind: input, shape index: {}]
  %s3 = inlined_call_operand.vmem [shape: bf16[32,96], index: 3, kind: input, shape index: {}]
  %s4 = inlined_call_operand.hbm [shape: f32[1,96], index: 4, kind: input, shape index: {}]
  %s5 = inlined_call_operand.hbm [shape: bf16[32,32], index: 5, kind: input, shape index: {}]
  %s6 = inlined_call_operand.hbm [shape: f32[1,32], index: 6, kind: input, shape index: {}]
  %s7 = inlined_call_operand.hbm [shape: f32[1,32], index: 7, kind: input, shape index: {}]
  %s8 = inlined_call_operand.hbm [shape: f32[1,32], index: 8, kind: input, shape index: {}]
  %s9 = inlined_call_operand.vmem [shape: bf16[32,64], index: 9, kind: input, shape index: {}]
  %s10 = inlined_call_operand.vmem [shape: f32[1,64], index: 10, kind: input, shape index: {}]
  %s11 = inlined_call_operand.vmem [shape: bf16[64,32], index: 11, kind: input, shape index: {}]
  %s12 = inlined_call_operand.vmem [shape: f32[1,32], index: 12, kind: input, shape index: {}]
  %s13 = inlined_call_operand.vmem [shape: f32[1,32], index: 13, kind: input, shape index: {}]
  %s14 = inlined_call_operand.vmem [shape: f32[1,32], index: 14, kind: input, shape index: {}]
  %s15 = inlined_call_operand.hbm [shape: f32[2,8,32], index: 15, kind: output, shape index: {}]
  %s16 = sld [smem:[#allocation0]]
  $region124: #{tpu_custom_call.1} parent=0
    _
  %s18 = ssub.s32 1, %s16
  %s19 = scalar_select 0, %s18, %s16
  $region1: #{tpu_custom_call.1} parent=0
    #allocation4 [shape = 'u8[1024]{0}', space=vmem, size = 0x400, scoped, tag = 'input window, operand 1']
    #allocation5 [shape = 's32[2]{0}', space=sflag, size = 0x8, scoped, tag = 'scoped memory for tpu_custom_call.1']
    #allocation6 [shape = 's32[2]{0}', space=sflag, size = 0x8, scoped, tag = 'scoped memory for tpu_custom_call.1']
    #allocation7 [shape = 'u8[512]{0}', space=vmem, size = 0x400, scoped, tag = 'input window, operand 4, single buffered']
    #allocation8 [shape = 's32[1]{0}', space=sflag, size = 0x4, scoped, tag = 'scoped memory for tpu_custom_call.1']
    #allocation9 [shape = 'u8[8192]{0}', space=vmem, size = 0x2000, scoped, tag = 'input window, operand 5, single buffered']
    #allocation10 [shape = 'u8[512]{0}', space=vmem, size = 0x400, scoped, tag = 'input window, operand 6, single buffered']
    #allocation11 [shape = 's32[1]{0}', space=sflag, size = 0x4, scoped, tag = 'scoped memory for tpu_custom_call.1']
    #allocation12 [shape = 'u8[512]{0}', space=vmem, size = 0x400, scoped, tag = 'input window, operand 7, single buffered']
    #allocation13 [shape = 'u8[512]{0}', space=vmem, size = 0x400, scoped, tag = 'input window, operand 8, single buffered']
    #allocation14 [shape = 's32[1]{0}', space=sflag, size = 0x4, scoped, tag = 'scoped memory for tpu_custom_call.1']
    #allocation15 [shape = 'u8[8192]{0}', space=vmem, size = 0x2000, scoped, tag = 'output window, operand 0']
    %20 = vsyncpa [#allocation5], 0
    %s21 = scalar_lea.sflag [#allocation5], 1
    %22 = vsyncpa %s21, 0
    %23 = vsyncpa [#allocation8], 0
    %24 = vsyncpa [#allocation11], 0
    %25 = vsyncpa [#allocation14], 0
    %26 = vsyncpa [#allocation6], 0
    %s27 = scalar_lea.sflag [#allocation6], 1
    %28 = vsyncpa %s27, 0
    loop: start=0, step=1, limit=4
    $region2: #{tpu_custom_call.1} parent=1 // loop_pre_header
      _
    $region3: #{tpu_custom_call.1} parent=1 // loop_header
      %s30 = sphi 0, %s34
      %p31 = scmp.ge.s32.totalorder %s30, 4
      %s40 = sphi 0, %s42
      %s43 = sphi 0, %s40
      %s44 = sphi 0, %s43
      %s60 = sphi 0, %s44
      %s66 = sphi 0, %s68
      %s69 = sphi 0, %s66
      %s70 = sphi 0, %s69
      %s86 = sphi 0, %s70
      %s90 = sphi 0, %s90
      %s92 = sphi 0, %s90
      %s93 = sphi 0, %s92
      %s107 = sphi 0, %s93
      %s111 = sphi 0, %s111
      %s113 = sphi 0, %s111
      %s114 = sphi 0, %s113
      %s128 = sphi 0, %s114
      %s132 = sphi 0, %s132
      %s134 = sphi 0, %s132
      %s135 = sphi 0, %s134
      %s149 = sphi 0, %s135
      %s153 = sphi 0, %s153
      %s155 = sphi 0, %s153
      %s156 = sphi 0, %s155
      %s170 = sphi 0, %s156
      %s174 = sphi 0, %s174
      %s176 = sphi 0, %s174
      %s177 = sphi 0, %s176
      %s191 = sphi 0, %s177
      %s195 = sphi 0, %s195
      %s197 = sphi 0, %s195
      %s198 = sphi 0, %s197
      %s212 = sphi 0, %s198
      %s216 = sphi 0, %s216
      %s218 = sphi 0, %s216
      %s219 = sphi 0, %s218
      %s233 = sphi 0, %s219
      %s237 = sphi 0, %s237
      %s239 = sphi 0, %s237
      %s240 = sphi 0, %s239
      %s254 = sphi 0, %s240
      %s258 = sphi 0, %s258
      %s260 = sphi 0, %s258
      %s261 = sphi 0, %s260
      %s275 = sphi 0, %s261
      %s279 = sphi 0, %s279
      %s281 = sphi 0, %s279
      %s282 = sphi 0, %s281
      %s296 = sphi 0, %s282
      %s300 = sphi 0, %s300
      %s302 = sphi 0, %s300
      %s303 = sphi 0, %s302
      %s317 = sphi 0, %s303
      %s321 = sphi 0, %s321
      %s323 = sphi 0, %s321
      %s324 = sphi 0, %s323
      %s338 = sphi 0, %s324
      %s342 = sphi 0, %s342
      %s344 = sphi 0, %s342
      %s345 = sphi 0, %s344
      %s359 = sphi 0, %s345
      %s365 = sphi 0, %s367
      %s368 = sphi 0, %s365
      %s369 = sphi 0, %s368
      %s385 = sphi 0, %s369
    $region4: #{tpu_custom_call.1} parent=1 // loop_header_branch
      %33 = sbr.rel (%p31) target = $region8
    $region5: #{tpu_custom_call.1} parent=1 // loop_body
      %s35 = ssub.s32 %s30, 1
      %s36 = ssub.s32 %s30, 2
      %s37 = sadd.s32 %s30, 1
      %s38 = ssub.s32 %s30, %s37
      %p39 = scmp.eq.s32.totalorder %s38, 0
      %s41 = sadd.s32 %s40, 1
      %s42 = scalar_select %p39, %s40, %s41
      %p45 = pneg %p39
      %p46 = scmp.eq.s32.totalorder %s30, 1
      %p47 = por %p45, %p46
      %p48 = scmp.ne.s32.totalorder %s40, %s43
      %p49 = scmp.eq.s32.totalorder %s30, 0
      %p50 = por %p48, %p49
      %p51 = scmp.ne.s32.totalorder %s40, %s43
      %p52 = scmp.eq.s32.totalorder %s35, 1
      %p53 = por %p51, %p52
      %p54 = scmp.ne.s32.totalorder %s43, %s44
      %p55 = scmp.eq.s32.totalorder %s35, 0
      %p56 = por %p54, %p55
      %p57 = scmp.ne.s32.totalorder %s43, %s44
      %p58 = scmp.eq.s32.totalorder %s36, 1
      %p59 = por %p57, %p58
      %p61 = scmp.ne.s32.totalorder %s44, %s60
      %p62 = scmp.eq.s32.totalorder %s36, 0
      %p63 = por %p61, %p62
      %s64 = ssub.s32 %s30, %s37
      %p65 = scmp.eq.s32.totalorder %s64, 0
      %s67 = sadd.s32 %s66, 1
      %s68 = scalar_select %p65, %s66, %s67
      %p71 = pneg %p65
      %p72 = scmp.eq.s32.totalorder %s30, 1
      %p73 = por %p71, %p72
      %p74 = scmp.ne.s32.totalorder %s66, %s69
      %p75 = scmp.eq.s32.totalorder %s30, 0
      %p76 = por %p74, %p75
      %p77 = scmp.ne.s32.totalorder %s66, %s69
      %p78 = scmp.eq.s32.totalorder %s35, 1
      %p79 = por %p77, %p78
      %p80 = scmp.ne.s32.totalorder %s69, %s70
      %p81 = scmp.eq.s32.totalorder %s35, 0
      %p82 = por %p80, %p81
      %p83 = scmp.ne.s32.totalorder %s69, %s70
      %p84 = scmp.eq.s32.totalorder %s36, 1
      %p85 = por %p83, %p84
      %p87 = scmp.ne.s32.totalorder %s70, %s86
      %p88 = scmp.eq.s32.totalorder %s36, 0
      %p89 = por %p87, %p88
      %s91 = sadd.s32 %s90, 1
      %p94 = scmp.eq.s32.totalorder %s30, 1
      %p95 = scmp.ne.s32.totalorder %s90, %s92
      %p96 = scmp.eq.s32.totalorder %s30, 0
      %p97 = por %p95, %p96
      %p98 = scmp.ne.s32.totalorder %s90, %s92
      %p99 = scmp.eq.s32.totalorder %s35, 1
      %p100 = por %p98, %p99
      %p101 = scmp.ne.s32.totalorder %s92, %s93
      %p102 = scmp.eq.s32.totalorder %s35, 0
      %p103 = por %p101, %p102
      %p104 = scmp.ne.s32.totalorder %s92, %s93
      %p105 = scmp.eq.s32.totalorder %s36, 1
      %p106 = por %p104, %p105
      %p108 = scmp.ne.s32.totalorder %s93, %s107
      %p109 = scmp.eq.s32.totalorder %s36, 0
      %p110 = por %p108, %p109
      %s112 = sadd.s32 %s111, 1
      %p115 = scmp.eq.s32.totalorder %s30, 1
      %p116 = scmp.ne.s32.totalorder %s111, %s113
      %p117 = scmp.eq.s32.totalorder %s30, 0
      %p118 = por %p116, %p117
      %p119 = scmp.ne.s32.totalorder %s111, %s113
      %p120 = scmp.eq.s32.totalorder %s35, 1
      %p121 = por %p119, %p120
      %p122 = scmp.ne.s32.totalorder %s113, %s114
      %p123 = scmp.eq.s32.totalorder %s35, 0
      %p124 = por %p122, %p123
      %p125 = scmp.ne.s32.totalorder %s113, %s114
      %p126 = scmp.eq.s32.totalorder %s36, 1
      %p127 = por %p125, %p126
      %p129 = scmp.ne.s32.totalorder %s114, %s128
      %p130 = scmp.eq.s32.totalorder %s36, 0
      %p131 = por %p129, %p130
      %s133 = sadd.s32 %s132, 1
      %p136 = scmp.eq.s32.totalorder %s30, 1
      %p137 = scmp.ne.s32.totalorder %s132, %s134
      %p138 = scmp.eq.s32.totalorder %s30, 0
      %p139 = por %p137, %p138
      %p140 = scmp.ne.s32.totalorder %s132, %s134
      %p141 = scmp.eq.s32.totalorder %s35, 1
      %p142 = por %p140, %p141
      %p143 = scmp.ne.s32.totalorder %s134, %s135
      %p144 = scmp.eq.s32.totalorder %s35, 0
      %p145 = por %p143, %p144
      %p146 = scmp.ne.s32.totalorder %s134, %s135
      %p147 = scmp.eq.s32.totalorder %s36, 1
      %p148 = por %p146, %p147
      %p150 = scmp.ne.s32.totalorder %s135, %s149
      %p151 = scmp.eq.s32.totalorder %s36, 0
      %p152 = por %p150, %p151
      %s154 = sadd.s32 %s153, 1
      %p157 = scmp.eq.s32.totalorder %s30, 1
      %p158 = scmp.ne.s32.totalorder %s153, %s155
      %p159 = scmp.eq.s32.totalorder %s30, 0
      %p160 = por %p158, %p159
      %p161 = scmp.ne.s32.totalorder %s153, %s155
      %p162 = scmp.eq.s32.totalorder %s35, 1
      %p163 = por %p161, %p162
      %p164 = scmp.ne.s32.totalorder %s155, %s156
      %p165 = scmp.eq.s32.totalorder %s35, 0
      %p166 = por %p164, %p165
      %p167 = scmp.ne.s32.totalorder %s155, %s156
      %p168 = scmp.eq.s32.totalorder %s36, 1
      %p169 = por %p167, %p168
      %p171 = scmp.ne.s32.totalorder %s156, %s170
      %p172 = scmp.eq.s32.totalorder %s36, 0
      %p173 = por %p171, %p172
      %s175 = sadd.s32 %s174, 1
      %p178 = scmp.eq.s32.totalorder %s30, 1
      %p179 = scmp.ne.s32.totalorder %s174, %s176
      %p180 = scmp.eq.s32.totalorder %s30, 0
      %p181 = por %p179, %p180
      %p182 = scmp.ne.s32.totalorder %s174, %s176
      %p183 = scmp.eq.s32.totalorder %s35, 1
      %p184 = por %p182, %p183
      %p185 = scmp.ne.s32.totalorder %s176, %s177
      %p186 = scmp.eq.s32.totalorder %s35, 0
      %p187 = por %p185, %p186
      %p188 = scmp.ne.s32.totalorder %s176, %s177
      %p189 = scmp.eq.s32.totalorder %s36, 1
      %p190 = por %p188, %p189
      %p192 = scmp.ne.s32.totalorder %s177, %s191
      %p193 = scmp.eq.s32.totalorder %s36, 0
      %p194 = por %p192, %p193
      %s196 = sadd.s32 %s195, 1
      %p199 = scmp.eq.s32.totalorder %s30, 1
      %p200 = scmp.ne.s32.totalorder %s195, %s197
      %p201 = scmp.eq.s32.totalorder %s30, 0
      %p202 = por %p200, %p201
      %p203 = scmp.ne.s32.totalorder %s195, %s197
      %p204 = scmp.eq.s32.totalorder %s35, 1
      %p205 = por %p203, %p204
      %p206 = scmp.ne.s32.totalorder %s197, %s198
      %p207 = scmp.eq.s32.totalorder %s35, 0
      %p208 = por %p206, %p207
      %p209 = scmp.ne.s32.totalorder %s197, %s198
      %p210 = scmp.eq.s32.totalorder %s36, 1
      %p211 = por %p209, %p210
      %p213 = scmp.ne.s32.totalorder %s198, %s212
      %p214 = scmp.eq.s32.totalorder %s36, 0
      %p215 = por %p213, %p214
      %s217 = sadd.s32 %s216, 1
      %p220 = scmp.eq.s32.totalorder %s30, 1
      %p221 = scmp.ne.s32.totalorder %s216, %s218
      %p222 = scmp.eq.s32.totalorder %s30, 0
      %p223 = por %p221, %p222
      %p224 = scmp.ne.s32.totalorder %s216, %s218
      %p225 = scmp.eq.s32.totalorder %s35, 1
      %p226 = por %p224, %p225
      %p227 = scmp.ne.s32.totalorder %s218, %s219
      %p228 = scmp.eq.s32.totalorder %s35, 0
      %p229 = por %p227, %p228
      %p230 = scmp.ne.s32.totalorder %s218, %s219
      %p231 = scmp.eq.s32.totalorder %s36, 1
      %p232 = por %p230, %p231
      %p234 = scmp.ne.s32.totalorder %s219, %s233
      %p235 = scmp.eq.s32.totalorder %s36, 0
      %p236 = por %p234, %p235
      %s238 = sadd.s32 %s237, 1
      %p241 = scmp.eq.s32.totalorder %s30, 1
      %p242 = scmp.ne.s32.totalorder %s237, %s239
      %p243 = scmp.eq.s32.totalorder %s30, 0
      %p244 = por %p242, %p243
      %p245 = scmp.ne.s32.totalorder %s237, %s239
      %p246 = scmp.eq.s32.totalorder %s35, 1
      %p247 = por %p245, %p246
      %p248 = scmp.ne.s32.totalorder %s239, %s240
      %p249 = scmp.eq.s32.totalorder %s35, 0
      %p250 = por %p248, %p249
      %p251 = scmp.ne.s32.totalorder %s239, %s240
      %p252 = scmp.eq.s32.totalorder %s36, 1
      %p253 = por %p251, %p252
      %p255 = scmp.ne.s32.totalorder %s240, %s254
      %p256 = scmp.eq.s32.totalorder %s36, 0
      %p257 = por %p255, %p256
      %s259 = sadd.s32 %s258, 1
      %p262 = scmp.eq.s32.totalorder %s30, 1
      %p263 = scmp.ne.s32.totalorder %s258, %s260
      %p264 = scmp.eq.s32.totalorder %s30, 0
      %p265 = por %p263, %p264
      %p266 = scmp.ne.s32.totalorder %s258, %s260
      %p267 = scmp.eq.s32.totalorder %s35, 1
      %p268 = por %p266, %p267
      %p269 = scmp.ne.s32.totalorder %s260, %s261
      %p270 = scmp.eq.s32.totalorder %s35, 0
      %p271 = por %p269, %p270
      %p272 = scmp.ne.s32.totalorder %s260, %s261
      %p273 = scmp.eq.s32.totalorder %s36, 1
      %p274 = por %p272, %p273
      %p276 = scmp.ne.s32.totalorder %s261, %s275
      %p277 = scmp.eq.s32.totalorder %s36, 0
      %p278 = por %p276, %p277
      %s280 = sadd.s32 %s279, 1
      %p283 = scmp.eq.s32.totalorder %s30, 1
      %p284 = scmp.ne.s32.totalorder %s279, %s281
      %p285 = scmp.eq.s32.totalorder %s30, 0
      %p286 = por %p284, %p285
      %p287 = scmp.ne.s32.totalorder %s279, %s281
      %p288 = scmp.eq.s32.totalorder %s35, 1
      %p289 = por %p287, %p288
      %p290 = scmp.ne.s32.totalorder %s281, %s282
      %p291 = scmp.eq.s32.totalorder %s35, 0
      %p292 = por %p290, %p291
      %p293 = scmp.ne.s32.totalorder %s281, %s282
      %p294 = scmp.eq.s32.totalorder %s36, 1
      %p295 = por %p293, %p294
      %p297 = scmp.ne.s32.totalorder %s282, %s296
      %p298 = scmp.eq.s32.totalorder %s36, 0
      %p299 = por %p297, %p298
      %s301 = sadd.s32 %s300, 1
      %p304 = scmp.eq.s32.totalorder %s30, 1
      %p305 = scmp.ne.s32.totalorder %s300, %s302
      %p306 = scmp.eq.s32.totalorder %s30, 0
      %p307 = por %p305, %p306
      %p308 = scmp.ne.s32.totalorder %s300, %s302
      %p309 = scmp.eq.s32.totalorder %s35, 1
      %p310 = por %p308, %p309
      %p311 = scmp.ne.s32.totalorder %s302, %s303
      %p312 = scmp.eq.s32.totalorder %s35, 0
      %p313 = por %p311, %p312
      %p314 = scmp.ne.s32.totalorder %s302, %s303
      %p315 = scmp.eq.s32.totalorder %s36, 1
      %p316 = por %p314, %p315
      %p318 = scmp.ne.s32.totalorder %s303, %s317
      %p319 = scmp.eq.s32.totalorder %s36, 0
      %p320 = por %p318, %p319
      %s322 = sadd.s32 %s321, 1
      %p325 = scmp.eq.s32.totalorder %s30, 1
      %p326 = scmp.ne.s32.totalorder %s321, %s323
      %p327 = scmp.eq.s32.totalorder %s30, 0
      %p328 = por %p326, %p327
      %p329 = scmp.ne.s32.totalorder %s321, %s323
      %p330 = scmp.eq.s32.totalorder %s35, 1
      %p331 = por %p329, %p330
      %p332 = scmp.ne.s32.totalorder %s323, %s324
      %p333 = scmp.eq.s32.totalorder %s35, 0
      %p334 = por %p332, %p333
      %p335 = scmp.ne.s32.totalorder %s323, %s324
      %p336 = scmp.eq.s32.totalorder %s36, 1
      %p337 = por %p335, %p336
      %p339 = scmp.ne.s32.totalorder %s324, %s338
      %p340 = scmp.eq.s32.totalorder %s36, 0
      %p341 = por %p339, %p340
      %s343 = sadd.s32 %s342, 1
      %p346 = scmp.eq.s32.totalorder %s30, 1
      %p347 = scmp.ne.s32.totalorder %s342, %s344
      %p348 = scmp.eq.s32.totalorder %s30, 0
      %p349 = por %p347, %p348
      %p350 = scmp.ne.s32.totalorder %s342, %s344
      %p351 = scmp.eq.s32.totalorder %s35, 1
      %p352 = por %p350, %p351
      %p353 = scmp.ne.s32.totalorder %s344, %s345
      %p354 = scmp.eq.s32.totalorder %s35, 0
      %p355 = por %p353, %p354
      %p356 = scmp.ne.s32.totalorder %s344, %s345
      %p357 = scmp.eq.s32.totalorder %s36, 1
      %p358 = por %p356, %p357
      %p360 = scmp.ne.s32.totalorder %s345, %s359
      %p361 = scmp.eq.s32.totalorder %s36, 0
      %p362 = por %p360, %p361
      %s363 = ssub.s32 %s30, %s37
      %p364 = scmp.eq.s32.totalorder %s363, 0
      %s366 = sadd.s32 %s365, 1
      %s367 = scalar_select %p364, %s365, %s366
      %p370 = pneg %p364
      %p371 = scmp.eq.s32.totalorder %s30, 1
      %p372 = por %p370, %p371
      %p373 = scmp.ne.s32.totalorder %s365, %s368
      %p374 = scmp.eq.s32.totalorder %s30, 0
      %p375 = por %p373, %p374
      %p376 = scmp.ne.s32.totalorder %s365, %s368
      %p377 = scmp.eq.s32.totalorder %s35, 1
      %p378 = por %p376, %p377
      %p379 = scmp.ne.s32.totalorder %s368, %s369
      %p380 = scmp.eq.s32.totalorder %s35, 0
      %p381 = por %p379, %p380
      %p382 = scmp.ne.s32.totalorder %s368, %s369
      %p383 = scmp.eq.s32.totalorder %s36, 1
      %p384 = por %p382, %p383
      %p386 = scmp.ne.s32.totalorder %s369, %s385
      %p387 = scmp.eq.s32.totalorder %s36, 0
      %p388 = por %p386, %p387
      %p389 = scmp.le.s32.totalorder 1, %s30
      %p390 = scmp.lt.s32.totalorder %s30, 3
      %p391 = pnand %p389, %p390
      %p392 = pneg %p391
      // Predicated region
      $region9: #{tpu_custom_call.1} parent=5 // pred_check
        _
      $region10: #{tpu_custom_call.1} parent=5 // pred_check_branch
        %394 = sbr.rel (%p391) target = $region12
      $region11: #{tpu_custom_call.1} parent=5 // pred_region
        %s395 = ssub.s32 %s30, 1
        // Predicated region
        $region13: #{tpu_custom_call.1} parent=11 // pred_check
          %p396 = pneg %p103
        $region14: #{tpu_custom_call.1} parent=11 // pred_check_branch
          %398 = sbr.rel (%p396) target = $region16
        $region15: #{tpu_custom_call.1} parent=11 // pred_region
          _
        $region16: #{tpu_custom_call.1} parent=11 // pred_fallthru
          _
        // Predicated region
        $region17: #{tpu_custom_call.1} parent=11 // pred_check
          %p399 = pneg %p124
        $region18: #{tpu_custom_call.1} parent=11 // pred_check_branch
          %401 = sbr.rel (%p399) target = $region20
        $region19: #{tpu_custom_call.1} parent=11 // pred_region
          _
        $region20: #{tpu_custom_call.1} parent=11 // pred_fallthru
          _
        // Predicated region
        $region21: #{tpu_custom_call.1} parent=11 // pred_check
          %p402 = pneg %p145
        $region22: #{tpu_custom_call.1} parent=11 // pred_check_branch
          %404 = sbr.rel (%p402) target = $region24
        $region23: #{tpu_custom_call.1} parent=11 // pred_region
          %s406 = ssub.s32 16, 16
          %407 = vsyncadd [#allocation8], %s406
          %s409 = sshll.u32 [#allocation7], 4
          %s410 = int_to_ptr.vmem [resolvable:$true] %s409
          %412 = dma.hbm_to_vmem [thread:$0]  %s4, 16, %s410, [#allocation8]
        $region24: #{tpu_custom_call.1} parent=11 // pred_fallthru
          _
        // Predicated region
        $region25: #{tpu_custom_call.1} parent=11 // pred_check
          %p413 = pneg %p166
        $region26: #{tpu_custom_call.1} parent=11 // pred_check_branch
          %415 = sbr.rel (%p413) target = $region28
        $region27: #{tpu_custom_call.1} parent=11 // pred_region
          %s417 = ssub.s32 256, 256
          %418 = vsyncadd [#allocation8], %s417
          %s419 = sshll.u32 [#allocation9], 4
          %s420 = int_to_ptr.vmem [resolvable:$true] %s419
          %425 = dma.hbm_to_vmem [thread:$0]  %s5, 256, %s420, [#allocation8], 64, 64, 4
        $region28: #{tpu_custom_call.1} parent=11 // pred_fallthru
          _
        // Predicated region
        $region29: #{tpu_custom_call.1} parent=11 // pred_check
          %p426 = pneg %p187
        $region30: #{tpu_custom_call.1} parent=11 // pred_check_branch
          %428 = sbr.rel (%p426) target = $region32
        $region31: #{tpu_custom_call.1} parent=11 // pred_region
          %s430 = ssub.s32 16, 16
          %431 = vsyncadd [#allocation11], %s430
          %s433 = sshll.u32 [#allocation10], 4
          %s434 = int_to_ptr.vmem [resolvable:$true] %s433
          %436 = dma.hbm_to_vmem [thread:$0]  %s6, 16, %s434, [#allocation11]
        $region32: #{tpu_custom_call.1} parent=11 // pred_fallthru
          _
        // Predicated region
        $region33: #{tpu_custom_call.1} parent=11 // pred_check
          %p437 = pneg %p208
        $region34: #{tpu_custom_call.1} parent=11 // pred_check_branch
          %439 = sbr.rel (%p437) target = $region36
        $region35: #{tpu_custom_call.1} parent=11 // pred_region
          %s441 = ssub.s32 16, 16
          %442 = vsyncadd [#allocation11], %s441
          %s444 = sshll.u32 [#allocation12], 4
          %s445 = int_to_ptr.vmem [resolvable:$true] %s444
          %447 = dma.hbm_to_vmem [thread:$0]  %s7, 16, %s445, [#allocation11]
        $region36: #{tpu_custom_call.1} parent=11 // pred_fallthru
          _
        // Predicated region
        $region37: #{tpu_custom_call.1} parent=11 // pred_check
          %p448 = pneg %p229
        $region38: #{tpu_custom_call.1} parent=11 // pred_check_branch
          %450 = sbr.rel (%p448) target = $region40
        $region39: #{tpu_custom_call.1} parent=11 // pred_region
          %s452 = ssub.s32 16, 16
          %453 = vsyncadd [#allocation14], %s452
          %s455 = sshll.u32 [#allocation13], 4
          %s456 = int_to_ptr.vmem [resolvable:$true] %s455
          %458 = dma.hbm_to_vmem [thread:$0]  %s8, 16, %s456, [#allocation14]
        $region40: #{tpu_custom_call.1} parent=11 // pred_fallthru
          _
        // Predicated region
        $region41: #{tpu_custom_call.1} parent=11 // pred_check
          %p459 = pneg %p250
        $region42: #{tpu_custom_call.1} parent=11 // pred_check_branch
          %461 = sbr.rel (%p459) target = $region44
        $region43: #{tpu_custom_call.1} parent=11 // pred_region
          _
        $region44: #{tpu_custom_call.1} parent=11 // pred_fallthru
          _
        // Predicated region
        $region45: #{tpu_custom_call.1} parent=11 // pred_check
          %p462 = pneg %p271
        $region46: #{tpu_custom_call.1} parent=11 // pred_check_branch
          %464 = sbr.rel (%p462) target = $region48
        $region47: #{tpu_custom_call.1} parent=11 // pred_region
          _
        $region48: #{tpu_custom_call.1} parent=11 // pred_fallthru
          _
        // Predicated region
        $region49: #{tpu_custom_call.1} parent=11 // pred_check
          %p465 = pneg %p292
        $region50: #{tpu_custom_call.1} parent=11 // pred_check_branch
          %467 = sbr.rel (%p465) target = $region52
        $region51: #{tpu_custom_call.1} parent=11 // pred_region
          _
        $region52: #{tpu_custom_call.1} parent=11 // pred_fallthru
          _
        // Predicated region
        $region53: #{tpu_custom_call.1} parent=11 // pred_check
          %p468 = pneg %p313
        $region54: #{tpu_custom_call.1} parent=11 // pred_check_branch
          %470 = sbr.rel (%p468) target = $region56
        $region55: #{tpu_custom_call.1} parent=11 // pred_region
          _
        $region56: #{tpu_custom_call.1} parent=11 // pred_fallthru
          _
        // Predicated region
        $region57: #{tpu_custom_call.1} parent=11 // pred_check
          %p471 = pneg %p334
        $region58: #{tpu_custom_call.1} parent=11 // pred_check_branch
          %473 = sbr.rel (%p471) target = $region60
        $region59: #{tpu_custom_call.1} parent=11 // pred_region
          _
        $region60: #{tpu_custom_call.1} parent=11 // pred_fallthru
          _
        // Predicated region
        $region61: #{tpu_custom_call.1} parent=11 // pred_check
          %p474 = pneg %p355
        $region62: #{tpu_custom_call.1} parent=11 // pred_check_branch
          %476 = sbr.rel (%p474) target = $region64
        $region63: #{tpu_custom_call.1} parent=11 // pred_region
          _
        $region64: #{tpu_custom_call.1} parent=11 // pred_fallthru
          _
      $region12: #{tpu_custom_call.1} parent=5 // pred_fallthru
        _
      %p477 = scmp.lt.s32.totalorder %s30, 2
      // Predicated region
      $region65: #{tpu_custom_call.1} parent=5 // pred_check
        %p478 = pneg %p477
      $region66: #{tpu_custom_call.1} parent=5 // pred_check_branch
        %480 = sbr.rel (%p478) target = $region68
      $region67: #{tpu_custom_call.1} parent=5 // pred_region
        // Predicated region
        $region69: #{tpu_custom_call.1} parent=67 // pred_check
          %p481 = pneg %p50
        $region70: #{tpu_custom_call.1} parent=67 // pred_check_branch
          %483 = sbr.rel (%p481) target = $region72
        $region71: #{tpu_custom_call.1} parent=67 // pred_region
          %p484 = scmp.lt.s32.totalorder %s30, 1
          %s485 = scalar_select %p484, %s30, 1
          %s486 = smul.addr %s485, 8
          %s487 = scalar_lea.vmem %s0, %s486
        $region72: #{tpu_custom_call.1} parent=67 // pred_fallthru
          _
        // Predicated region
        $region73: #{tpu_custom_call.1} parent=67 // pred_check
          %p488 = pneg %p76
        $region74: #{tpu_custom_call.1} parent=67 // pred_check_branch
          %490 = sbr.rel (%p488) target = $region76
        $region75: #{tpu_custom_call.1} parent=67 // pred_region
          %s491 = sand.u32 %s66, 1
          %s492 = scalar_lea.sflag [#allocation5], %s491
          %s493 = sand.u32 %s66, 1
          %s494 = scalar_lea.vmem [#allocation4], %s493
          %s496 = ssub.s32 16, 16
          %497 = vsyncadd %s492, %s496
          %s498 = smul.addr %s30, 16
          %s499 = scalar_lea.hbm %s1, %s498
          %s501 = sshll.u32 %s494, 4
          %s502 = int_to_ptr.vmem [resolvable:$true] %s501
          %504 = dma.hbm_to_vmem [thread:$0]  %s499, 16, %s502, %s492
        $region76: #{tpu_custom_call.1} parent=67 // pred_fallthru
          _
      $region68: #{tpu_custom_call.1} parent=5 // pred_fallthru
        _
      %p505 = scmp.le.s32.totalorder 1, %s30
      %p506 = scmp.lt.s32.totalorder %s30, 3
      %p507 = pnand %p505, %p506
      %p508 = pneg %p507
      // Predicated region
      $region77: #{tpu_custom_call.1} parent=5 // pred_check
        _
      $region78: #{tpu_custom_call.1} parent=5 // pred_check_branch
        %510 = sbr.rel (%p507) target = $region80
      $region79: #{tpu_custom_call.1} parent=5 // pred_region
        %s511 = ssub.s32 %s30, 1
        %s512 = sand.u32 %s69, 1
        %s513 = scalar_lea.sflag [#allocation5], %s512
        %s514 = sand.u32 %s69, 1
        %s515 = scalar_lea.vmem [#allocation4], %s514
        // Predicated region
        $region81: #{tpu_custom_call.1} parent=79 // pred_check
          %p516 = pneg %p82
        $region82: #{tpu_custom_call.1} parent=79 // pred_check_branch
          %518 = sbr.rel (%p516) target = $region84
        $region83: #{tpu_custom_call.1} parent=79 // pred_region
          %519 = dma.done %s513, 16
        $region84: #{tpu_custom_call.1} parent=79 // pred_fallthru
          _
        // Predicated region
        $region85: #{tpu_custom_call.1} parent=79 // pred_check
          %p520 = pneg %p145
        $region86: #{tpu_custom_call.1} parent=79 // pred_check_branch
          %522 = sbr.rel (%p520) target = $region88
        $region87: #{tpu_custom_call.1} parent=79 // pred_region
          %523 = dma.done [#allocation8], 16
        $region88: #{tpu_custom_call.1} parent=79 // pred_fallthru
          _
        // Predicated region
        $region89: #{tpu_custom_call.1} parent=79 // pred_check
          %p524 = pneg %p166
        $region90: #{tpu_custom_call.1} parent=79 // pred_check_branch
          %526 = sbr.rel (%p524) target = $region92
        $region91: #{tpu_custom_call.1} parent=79 // pred_region
          %527 = dma.done [#allocation8], 256
        $region92: #{tpu_custom_call.1} parent=79 // pred_fallthru
          _
        // Predicated region
        $region93: #{tpu_custom_call.1} parent=79 // pred_check
          %p528 = pneg %p187
        $region94: #{tpu_custom_call.1} parent=79 // pred_check_branch
          %530 = sbr.rel (%p528) target = $region96
        $region95: #{tpu_custom_call.1} parent=79 // pred_region
          %531 = dma.done [#allocation11], 16
        $region96: #{tpu_custom_call.1} parent=79 // pred_fallthru
          _
        // Predicated region
        $region97: #{tpu_custom_call.1} parent=79 // pred_check
          %p532 = pneg %p208
        $region98: #{tpu_custom_call.1} parent=79 // pred_check_branch
          %534 = sbr.rel (%p532) target = $region100
        $region99: #{tpu_custom_call.1} parent=79 // pred_region
          %535 = dma.done [#allocation11], 16
        $region100: #{tpu_custom_call.1} parent=79 // pred_fallthru
          _
        // Predicated region
        $region101: #{tpu_custom_call.1} parent=79 // pred_check
          %p536 = pneg %p229
        $region102: #{tpu_custom_call.1} parent=79 // pred_check_branch
          %538 = sbr.rel (%p536) target = $region104
        $region103: #{tpu_custom_call.1} parent=79 // pred_region
          %539 = dma.done [#allocation14], 16
        $region104: #{tpu_custom_call.1} parent=79 // pred_fallthru
          _
        %p540 = scmp.lt.s32.totalorder %s35, 1
        %s541 = scalar_select %p540, %s35, 1
        %s542 = smul.addr %s541, 8
        %s543 = scalar_lea.vmem %s0, %s542
        %p544 = pneg %p56
        %p545 = pneg %p53
        %s546 = sand.u32 %s69, 1
        %s547 = scalar_lea.sflag [#allocation5], %s546
        %s548 = sand.u32 %s69, 1
        %s549 = scalar_lea.vmem [#allocation4], %s548
        %p550 = pneg %p82
        %p551 = pneg %p79
        %p552 = pneg %p103
        %p553 = pneg %p100
        %p554 = pneg %p124
        %p555 = pneg %p121
        %p556 = pneg %p145
        %p557 = pneg %p142
        %p558 = pneg %p166
        %p559 = pneg %p163
        %p560 = pneg %p187
        %p561 = pneg %p184
        %p562 = pneg %p208
        %p563 = pneg %p205
        %p564 = pneg %p229
        %p565 = pneg %p226
        %p566 = pneg %p250
        %p567 = pneg %p247
        %p568 = pneg %p271
        %p569 = pneg %p268
        %p570 = pneg %p292
        %p571 = pneg %p289
        %p572 = pneg %p313
        %p573 = pneg %p310
        %p574 = pneg %p334
        %p575 = pneg %p331
        %p576 = pneg %p355
        %p577 = pneg %p352
        %p578 = pneg %p381
        %p579 = pneg %p378
        %s580 = sand.u32 %s368, 1
        %s581 = scalar_lea.sflag [#allocation6], %s580
        %s582 = sand.u32 %s368, 1
        %s583 = smul.addr %s582, 8
        %s584 = scalar_lea.vmem [#allocation15], %s583
        %p585 = scmp.lt.s32.totalorder %s35, 1
        %s586 = scalar_select %p585, %s35, 1
        %s587 = smul.addr %s586, 8
        %s588 = scalar_lea.vmem %s0, %s587
        %v590 = vld [vmem:[%s588] sm:$0xff]
        %v591 = vld [vmem:[%s2] sm:$0xf]
        %v592 = vld [vmem:[%s2 + $0x4] sm:$0xf]
        %v593 = vld [vmem:[%s2 + $0x8] sm:$0xf]
        %v594 = vld [vmem:[%s2 + $0xc] sm:$0xf]
        %v595 = vunpack.c.l.bf16 %v591
        %v596 = vunpack.c.l.bf16 %v592
        %v597 = vunpack.c.l.bf16 %v593
        %v598 = vunpack.c.l.bf16 %v594
        %v599 = vld [vmem:[%s515] sm:$0x1]
        %v601 = vlaneseq
        %v602 = vshrl.u32 %v601, 7
        %v603 = vsub.s32 0, %v602
        %v604 = vrot.slane %v599, %v603
        %v606 = vadd.f32 %v595, %v604
        %v607 = vadd.f32 %v596, %v604
        %v608 = vadd.f32 %v597, %v604
        %v609 = vadd.f32 %v598, %v604
        %vm610 = vcmask 64512
        %611 = vst.msk [vmem:[#allocation2] sm:$0xff] %vm610, %v606
        %612 = vst.msk [vmem:[#allocation2 + $0x8] sm:$0xff] %vm610, %v607
        %613 = vst.msk [vmem:[#allocation2 + $0x10] sm:$0xff] %vm610, %v608
        %614 = vst.msk [vmem:[#allocation2 + $0x18] sm:$0xff] %vm610, %v609
        loop: start=0, step=1, limit=2
        $region105: #{tpu_custom_call.1} parent=79 // loop_pre_header
          _
        $region106: #{tpu_custom_call.1} parent=79 // loop_header
          %s616 = sphi 0, %s620
          %p617 = scmp.ge.s32.totalorder %s616, 2
          %v621 = vphi %v590, %v1478
        $region107: #{tpu_custom_call.1} parent=79 // loop_header_branch
          %619 = sbr.rel (%p617) target = $region111
        $region108: #{tpu_custom_call.1} parent=79 // loop_body
          %v622 = vpack.c.bf16 %v621, %v621
          %v623 = vld [vmem:[%s3] sm:$0xf]
          %v624 = vld [vmem:[%s3 + $0x4] sm:$0xf]
          %v625 = vld [vmem:[%s3 + $0x8] sm:$0xf]
          %v626 = vld [vmem:[%s3 + $0xc] sm:$0xf]
          %v627 = vld [vmem:[#allocation7] sm:$0x1]
          %v629 = vlaneseq
          %v630 = vshrl.u32 %v629, 7
          %v631 = vsub.s32 0, %v630
          %v632 = vrot.slane %v627, %v631
          %v638 = vunpack.c.l.b16 %v623
          %v639 = vunpack.c.l.b16 %v624
          %v640 = vunpack.c.l.b16 %v625
          %v641 = vunpack.c.l.b16 %v626
          %v642 = vpack.c.b16 %v639, %v638
          %v643 = vpack.c.b16 %v641, %v640
          %vm646 = vcmask 261120
          %v648 = vsel %vm646, %v622, 0
          %650 = vmatprep.subr.bf16.mxu0 0
          %651 = vmatpush1.bf16.msra.mxu0 0
          %652 = vmatprep.subr.bf16.mxu0 0
          %653 = vmatpush1.bf16.msra.mxu0 0
          %654 = vmatprep.subr.bf16.mxu0 0
          %655 = vmatpush1.bf16.msra.mxu0 0
          %656 = vmatprep.subr.bf16.mxu0 0
          %657 = vmatpush1.bf16.msra.mxu0 0
          %658 = vmatprep.subr.bf16.mxu0 0
          %659 = vmatpush1.bf16.msra.mxu0 0
          %660 = vmatprep.subr.bf16.mxu0 0
          %661 = vmatpush1.bf16.msra.mxu0 0
          %662 = vmatprep.subr.bf16.mxu0 0
          %663 = vmatpush1.bf16.msra.mxu0 %v643
          %664 = vmatprep.subr.bf16.mxu0 0
          %665 = vmatpush1.bf16.msra.mxu0 %v642
          %666 = vmatprep.subr.bf16.mxu0 0
          %667 = vmatpush2.bf16.msra.mxu0 0
          %668 = vmatprep.subr.bf16.mxu0 0
          %669 = vmatpush2.bf16.msra.mxu0 0
          %670 = vmatprep.subr.bf16.mxu0 0
          %671 = vmatpush2.bf16.msra.mxu0 0
          %672 = vmatprep.subr.bf16.mxu0 0
          %673 = vmatpush2.bf16.msra.mxu0 0
          %674 = vmatprep.subr.bf16.mxu0 0
          %675 = vmatpush2.bf16.msra.mxu0 0
          %676 = vmatprep.subr.bf16.mxu0 0
          %677 = vmatpush2.bf16.msra.mxu0 0
          %678 = vmatprep.subr.bf16.mxu0 0
          %679 = vmatpush2.bf16.msra.mxu0 0
          %680 = vmatprep.subr.bf16.mxu0 0
          %681 = vmatpush2.bf16.msra.mxu0 0
          %682 = vmatprep.mubr.bf16.mxu0 0
          %683 = vmatmul.mubr.bf16.gmra.mxu0 %v648
          %v684 = vpop.f32.mrf.mxu0
          %v685 = vadd.f32 %v632, %v684
          %v686 = vpop.f32.mrf.mxu0
          %v687 = vpop.f32.mrf.mxu0
          %v688 = vpop.f32.mrf.mxu0
          %689 = vdwg.mxu0
          %v690 = vpack.c.bf16 %v685, %v685
          %v691 = vld [vmem:[#allocation2] sm:$0xff]
          %693 = vrot.lane.b32.xlu0 %v690, 96
          %v694 = vpop.permute.xlu0 %693
          %v696 = vsel %vm610, %v690, 0
          %v699 = vsel %vm610, %v694, 0
          %701 = vmatprep.subr.bf16.mxu0 0
          %702 = vmatpush1.bf16.xpose.msra.mxu0 0
          %703 = vmatprep.subr.bf16.mxu0 0
          %704 = vmatpush1.bf16.xpose.msra.mxu0 0
          %705 = vmatprep.subr.bf16.mxu0 0
          %706 = vmatpush1.bf16.xpose.msra.mxu0 0
          %707 = vmatprep.subr.bf16.mxu0 0
          %708 = vmatpush1.bf16.xpose.msra.mxu0 0
          %709 = vmatprep.subr.bf16.mxu0 0
          %710 = vmatpush1.bf16.xpose.msra.mxu0 0
          %711 = vmatprep.subr.bf16.mxu0 0
          %712 = vmatpush1.bf16.xpose.msra.mxu0 0
          %713 = vmatprep.subr.bf16.mxu0 0
          %714 = vmatpush1.bf16.xpose.msra.mxu0 0
          %715 = vmatprep.subr.bf16.mxu0 0
          %716 = vmatpush1.bf16.xpose.msra.mxu0 %v699
          %717 = vmatprep.subr.bf16.mxu0 0
          %718 = vmatpush2.bf16.xpose.msra.mxu0 0
          %719 = vmatprep.subr.bf16.mxu0 0
          %720 = vmatpush2.bf16.xpose.msra.mxu0 0
          %721 = vmatprep.subr.bf16.mxu0 0
          %722 = vmatpush2.bf16.xpose.msra.mxu0 0
          %723 = vmatprep.subr.bf16.mxu0 0
          %724 = vmatpush2.bf16.xpose.msra.mxu0 0
          %725 = vmatprep.subr.bf16.mxu0 0
          %726 = vmatpush2.bf16.xpose.msra.mxu0 0
          %727 = vmatprep.subr.bf16.mxu0 0
          %728 = vmatpush2.bf16.xpose.msra.mxu0 0
          %729 = vmatprep.subr.bf16.mxu0 0
          %730 = vmatpush2.bf16.xpose.msra.mxu0 0
          %731 = vmatprep.subr.bf16.mxu0 0
          %732 = vmatpush2.bf16.xpose.msra.mxu0 0
          %733 = vmatprep.mubr.bf16.mxu0 0
          %734 = vmatmul.mubr.bf16.gmra.mxu0 %v696
          %v735 = vpop.f32.mrf.mxu0
          %v736 = vadd.f32 %v691, %v735
          %v737 = vpop.f32.mrf.mxu0
          %v738 = vpop.f32.mrf.mxu0
          %v739 = vpop.f32.mrf.mxu0
          %740 = vdwg.mxu0
          %v741 = vsel %vm610, %v736, -inf
          %742 = vmax.xlane.f32.xlu0 %v741
          %v743 = vpop.xlane.xlu0 %742
          %v744 = vsub.f32 %v736, %v743
          %v745 = vmul.f32 %v744, 1.442695
          %v746 = vpow.pop %v745
          %v747 = vsel %vm610, %v746, 0.0
          %748 = vadd.xlane.f32.xlu0 %v747
          %v749 = vpop.xlane.xlu0 %748
          %v750 = vrcp.pop %v749
          %v751 = vmul.f32 %v746, %v750
          %v752 = vpack.c.bf16 %v751, %v751
          %753 = vrot.lane.b32.xlu0 %v690, 64
          %v754 = vpop.permute.xlu0 %753
          %v756 = vsel %vm610, %v752, 0
          %vm758 = vcmask 1043456
          %v760 = vsel %vm758, %v754, 0
          %762 = vmatprep.subr.bf16.mxu0 0
          %763 = vmatpush1.bf16.msra.mxu0 0
          %764 = vmatprep.subr.bf16.mxu0 0
          %765 = vmatpush1.bf16.msra.mxu0 0
          %766 = vmatprep.subr.bf16.mxu0 0
          %767 = vmatpush1.bf16.msra.mxu0 0
          %768 = vmatprep.subr.bf16.mxu0 0
          %769 = vmatpush1.bf16.msra.mxu0 0
          %770 = vmatprep.subr.bf16.mxu0 0
          %771 = vmatpush1.bf16.msra.mxu0 0
          %772 = vmatprep.subr.bf16.mxu0 0
          %773 = vmatpush1.bf16.msra.mxu0 0
          %774 = vmatprep.subr.bf16.mxu0 0
          %775 = vmatpush1.bf16.msra.mxu0 0
          %776 = vmatprep.subr.bf16.mxu0 0
          %777 = vmatpush1.bf16.msra.mxu0 %v760
          %778 = vmatprep.subr.bf16.mxu0 0
          %779 = vmatpush2.bf16.msra.mxu0 0
          %780 = vmatprep.subr.bf16.mxu0 0
          %781 = vmatpush2.bf16.msra.mxu0 0
          %782 = vmatprep.subr.bf16.mxu0 0
          %783 = vmatpush2.bf16.msra.mxu0 0
          %784 = vmatprep.subr.bf16.mxu0 0
          %785 = vmatpush2.bf16.msra.mxu0 0
          %786 = vmatprep.subr.bf16.mxu0 0
          %787 = vmatpush2.bf16.msra.mxu0 0
          %788 = vmatprep.subr.bf16.mxu0 0
          %789 = vmatpush2.bf16.msra.mxu0 0
          %790 = vmatprep.subr.bf16.mxu0 0
          %791 = vmatpush2.bf16.msra.mxu0 0
          %792 = vmatprep.subr.bf16.mxu0 0
          %793 = vmatpush2.bf16.msra.mxu0 0
          %794 = vmatprep.mubr.bf16.mxu0 0
          %795 = vmatmul.mubr.bf16.gmra.mxu0 %v756
          %v796 = vpop.f32.mrf.mxu0
          %v797 = vadd.f32 0.0, %v796
          %v798 = vpop.f32.mrf.mxu0
          %v799 = vpop.f32.mrf.mxu0
          %v800 = vpop.f32.mrf.mxu0
          %801 = vdwg.mxu0
          %s802 = scalar_lea.vmem [#allocation2], 8
          %v803 = vld [vmem:[%s802] sm:$0xff]
          %804 = vrot.lane.b32.xlu0 %v690, 120
          %v805 = vpop.permute.xlu0 %804
          %806 = vrot.lane.b32.xlu0 %v690, 88
          %v807 = vpop.permute.xlu0 %806
          %v809 = vsel %vm610, %v805, 0
          %v812 = vsel %vm610, %v807, 0
          %814 = vmatprep.subr.bf16.mxu0 0
          %815 = vmatpush1.bf16.xpose.msra.mxu0 0
          %816 = vmatprep.subr.bf16.mxu0 0
          %817 = vmatpush1.bf16.xpose.msra.mxu0 0
          %818 = vmatprep.subr.bf16.mxu0 0
          %819 = vmatpush1.bf16.xpose.msra.mxu0 0
          %820 = vmatprep.subr.bf16.mxu0 0
          %821 = vmatpush1.bf16.xpose.msra.mxu0 0
          %822 = vmatprep.subr.bf16.mxu0 0
          %823 = vmatpush1.bf16.xpose.msra.mxu0 0
          %824 = vmatprep.subr.bf16.mxu0 0
          %825 = vmatpush1.bf16.xpose.msra.mxu0 0
          %826 = vmatprep.subr.bf16.mxu0 0
          %827 = vmatpush1.bf16.xpose.msra.mxu0 0
          %828 = vmatprep.subr.bf16.mxu0 0
          %829 = vmatpush1.bf16.xpose.msra.mxu0 %v812
          %830 = vmatprep.subr.bf16.mxu0 0
          %831 = vmatpush2.bf16.xpose.msra.mxu0 0
          %832 = vmatprep.subr.bf16.mxu0 0
          %833 = vmatpush2.bf16.xpose.msra.mxu0 0
          %834 = vmatprep.subr.bf16.mxu0 0
          %835 = vmatpush2.bf16.xpose.msra.mxu0 0
          %836 = vmatprep.subr.bf16.mxu0 0
          %837 = vmatpush2.bf16.xpose.msra.mxu0 0
          %838 = vmatprep.subr.bf16.mxu0 0
          %839 = vmatpush2.bf16.xpose.msra.mxu0 0
          %840 = vmatprep.subr.bf16.mxu0 0
          %841 = vmatpush2.bf16.xpose.msra.mxu0 0
          %842 = vmatprep.subr.bf16.mxu0 0
          %843 = vmatpush2.bf16.xpose.msra.mxu0 0
          %844 = vmatprep.subr.bf16.mxu0 0
          %845 = vmatpush2.bf16.xpose.msra.mxu0 0
          %846 = vmatprep.mubr.bf16.mxu0 0
          %847 = vmatmul.mubr.bf16.gmra.mxu0 %v809
          %v848 = vpop.f32.mrf.mxu0
          %v849 = vadd.f32 %v803, %v848
          %v850 = vpop.f32.mrf.mxu0
          %v851 = vpop.f32.mrf.mxu0
          %v852 = vpop.f32.mrf.mxu0
          %853 = vdwg.mxu0
          %v854 = vsel %vm610, %v849, -inf
          %855 = vmax.xlane.f32.xlu0 %v854
          %v856 = vpop.xlane.xlu0 %855
          %v857 = vsub.f32 %v849, %v856
          %v858 = vmul.f32 %v857, 1.442695
          %v859 = vpow.pop %v858
          %v860 = vsel %vm610, %v859, 0.0
          %861 = vadd.xlane.f32.xlu0 %v860
          %v862 = vpop.xlane.xlu0 %861
          %v863 = vrcp.pop %v862
          %v864 = vmul.f32 %v859, %v863
          %v865 = vpack.c.bf16 %v864, %v864
          %866 = vrot.lane.b32.xlu0 %v690, 56
          %v867 = vpop.permute.xlu0 %866
          %v869 = vsel %vm610, %v865, 0
          %v872 = vsel %vm758, %v867, 0
          %874 = vmatprep.subr.bf16.mxu0 0
          %875 = vmatpush1.bf16.msra.mxu0 0
          %876 = vmatprep.subr.bf16.mxu0 0
          %877 = vmatpush1.bf16.msra.mxu0 0
          %878 = vmatprep.subr.bf16.mxu0 0
          %879 = vmatpush1.bf16.msra.mxu0 0
          %880 = vmatprep.subr.bf16.mxu0 0
          %881 = vmatpush1.bf16.msra.mxu0 0
          %882 = vmatprep.subr.bf16.mxu0 0
          %883 = vmatpush1.bf16.msra.mxu0 0
          %884 = vmatprep.subr.bf16.mxu0 0
          %885 = vmatpush1.bf16.msra.mxu0 0
          %886 = vmatprep.subr.bf16.mxu0 0
          %887 = vmatpush1.bf16.msra.mxu0 0
          %888 = vmatprep.subr.bf16.mxu0 0
          %889 = vmatpush1.bf16.msra.mxu0 %v872
          %890 = vmatprep.subr.bf16.mxu0 0
          %891 = vmatpush2.bf16.msra.mxu0 0
          %892 = vmatprep.subr.bf16.mxu0 0
          %893 = vmatpush2.bf16.msra.mxu0 0
          %894 = vmatprep.subr.bf16.mxu0 0
          %895 = vmatpush2.bf16.msra.mxu0 0
          %896 = vmatprep.subr.bf16.mxu0 0
          %897 = vmatpush2.bf16.msra.mxu0 0
          %898 = vmatprep.subr.bf16.mxu0 0
          %899 = vmatpush2.bf16.msra.mxu0 0
          %900 = vmatprep.subr.bf16.mxu0 0
          %901 = vmatpush2.bf16.msra.mxu0 0
          %902 = vmatprep.subr.bf16.mxu0 0
          %903 = vmatpush2.bf16.msra.mxu0 0
          %904 = vmatprep.subr.bf16.mxu0 0
          %905 = vmatpush2.bf16.msra.mxu0 0
          %906 = vmatprep.mubr.bf16.mxu0 0
          %907 = vmatmul.mubr.bf16.gmra.mxu0 %v869
          %v908 = vpop.f32.mrf.mxu0
          %v909 = vadd.f32 0.0, %v908
          %v910 = vpop.f32.mrf.mxu0
          %v911 = vpop.f32.mrf.mxu0
          %v912 = vpop.f32.mrf.mxu0
          %913 = vdwg.mxu0
          %915 = vrot.lane.b32.xlu0 %v909, 8
          %v916 = vpop.permute.xlu0 %915
          %v918 = vsel %vm610, %v797, %v916
          %v919 = vpack.c.bf16 %v918, %v918
          %vm920 = vcmask 125952
          %921 = vst.msk [vmem:[#allocation3] sm:$0xf] %vm920, %v919
          %s922 = scalar_lea.vmem [#allocation2], 16
          %v923 = vld [vmem:[%s922] sm:$0xff]
          %924 = vrot.lane.b32.xlu0 %v690, 112
          %v925 = vpop.permute.xlu0 %924
          %926 = vrot.lane.b32.xlu0 %v690, 80
          %v927 = vpop.permute.xlu0 %926
          %v929 = vsel %vm610, %v925, 0
          %v932 = vsel %vm610, %v927, 0
          %934 = vmatprep.subr.bf16.mxu0 0
          %935 = vmatpush1.bf16.xpose.msra.mxu0 0
          %936 = vmatprep.subr.bf16.mxu0 0
          %937 = vmatpush1.bf16.xpose.msra.mxu0 0
          %938 = vmatprep.subr.bf16.mxu0 0
          %939 = vmatpush1.bf16.xpose.msra.mxu0 0
          %940 = vmatprep.subr.bf16.mxu0 0
          %941 = vmatpush1.bf16.xpose.msra.mxu0 0
          %942 = vmatprep.subr.bf16.mxu0 0
          %943 = vmatpush1.bf16.xpose.msra.mxu0 0
          %944 = vmatprep.subr.bf16.mxu0 0
          %945 = vmatpush1.bf16.xpose.msra.mxu0 0
          %946 = vmatprep.subr.bf16.mxu0 0
          %947 = vmatpush1.bf16.xpose.msra.mxu0 0
          %948 = vmatprep.subr.bf16.mxu0 0
          %949 = vmatpush1.bf16.xpose.msra.mxu0 %v932
          %950 = vmatprep.subr.bf16.mxu0 0
          %951 = vmatpush2.bf16.xpose.msra.mxu0 0
          %952 = vmatprep.subr.bf16.mxu0 0
          %953 = vmatpush2.bf16.xpose.msra.mxu0 0
          %954 = vmatprep.subr.bf16.mxu0 0
          %955 = vmatpush2.bf16.xpose.msra.mxu0 0
          %956 = vmatprep.subr.bf16.mxu0 0
          %957 = vmatpush2.bf16.xpose.msra.mxu0 0
          %958 = vmatprep.subr.bf16.mxu0 0
          %959 = vmatpush2.bf16.xpose.msra.mxu0 0
          %960 = vmatprep.subr.bf16.mxu0 0
          %961 = vmatpush2.bf16.xpose.msra.mxu0 0
          %962 = vmatprep.subr.bf16.mxu0 0
          %963 = vmatpush2.bf16.xpose.msra.mxu0 0
          %964 = vmatprep.subr.bf16.mxu0 0
          %965 = vmatpush2.bf16.xpose.msra.mxu0 0
          %966 = vmatprep.mubr.bf16.mxu0 0
          %967 = vmatmul.mubr.bf16.gmra.mxu0 %v929
          %v968 = vpop.f32.mrf.mxu0
          %v969 = vadd.f32 %v923, %v968
          %v970 = vpop.f32.mrf.mxu0
          %v971 = vpop.f32.mrf.mxu0
          %v972 = vpop.f32.mrf.mxu0
          %973 = vdwg.mxu0
          %v974 = vsel %vm610, %v969, -inf
          %975 = vmax.xlane.f32.xlu0 %v974
          %v976 = vpop.xlane.xlu0 %975
          %v977 = vsub.f32 %v969, %v976
          %v978 = vmul.f32 %v977, 1.442695
          %v979 = vpow.pop %v978
          %v980 = vsel %vm610, %v979, 0.0
          %981 = vadd.xlane.f32.xlu0 %v980
          %v982 = vpop.xlane.xlu0 %981
          %v983 = vrcp.pop %v982
          %v984 = vmul.f32 %v979, %v983
          %v985 = vpack.c.bf16 %v984, %v984
          %986 = vrot.lane.b32.xlu0 %v690, 48
          %v987 = vpop.permute.xlu0 %986
          %v989 = vsel %vm610, %v985, 0
          %v992 = vsel %vm758, %v987, 0
          %994 = vmatprep.subr.bf16.mxu0 0
          %995 = vmatpush1.bf16.msra.mxu0 0
          %996 = vmatprep.subr.bf16.mxu0 0
          %997 = vmatpush1.bf16.msra.mxu0 0
          %998 = vmatprep.subr.bf16.mxu0 0
          %999 = vmatpush1.bf16.msra.mxu0 0
          %1000 = vmatprep.subr.bf16.mxu0 0
          %1001 = vmatpush1.bf16.msra.mxu0 0
          %1002 = vmatprep.subr.bf16.mxu0 0
          %1003 = vmatpush1.bf16.msra.mxu0 0
          %1004 = vmatprep.subr.bf16.mxu0 0
          %1005 = vmatpush1.bf16.msra.mxu0 0
          %1006 = vmatprep.subr.bf16.mxu0 0
          %1007 = vmatpush1.bf16.msra.mxu0 0
          %1008 = vmatprep.subr.bf16.mxu0 0
          %1009 = vmatpush1.bf16.msra.mxu0 %v992
          %1010 = vmatprep.subr.bf16.mxu0 0
          %1011 = vmatpush2.bf16.msra.mxu0 0
          %1012 = vmatprep.subr.bf16.mxu0 0
          %1013 = vmatpush2.bf16.msra.mxu0 0
          %1014 = vmatprep.subr.bf16.mxu0 0
          %1015 = vmatpush2.bf16.msra.mxu0 0
          %1016 = vmatprep.subr.bf16.mxu0 0
          %1017 = vmatpush2.bf16.msra.mxu0 0
          %1018 = vmatprep.subr.bf16.mxu0 0
          %1019 = vmatpush2.bf16.msra.mxu0 0
          %1020 = vmatprep.subr.bf16.mxu0 0
          %1021 = vmatpush2.bf16.msra.mxu0 0
          %1022 = vmatprep.subr.bf16.mxu0 0
          %1023 = vmatpush2.bf16.msra.mxu0 0
          %1024 = vmatprep.subr.bf16.mxu0 0
          %1025 = vmatpush2.bf16.msra.mxu0 0
          %1026 = vmatprep.mubr.bf16.mxu0 0
          %1027 = vmatmul.mubr.bf16.gmra.mxu0 %v989
          %v1028 = vpop.f32.mrf.mxu0
          %v1029 = vadd.f32 0.0, %v1028
          %v1030 = vpop.f32.mrf.mxu0
          %v1031 = vpop.f32.mrf.mxu0
          %v1032 = vpop.f32.mrf.mxu0
          %1033 = vdwg.mxu0
          %s1034 = scalar_lea.vmem [#allocation2], 24
          %v1035 = vld [vmem:[%s1034] sm:$0xff]
          %1036 = vrot.lane.b32.xlu0 %v690, 104
          %v1037 = vpop.permute.xlu0 %1036
          %1038 = vrot.lane.b32.xlu0 %v690, 72
          %v1039 = vpop.permute.xlu0 %1038
          %v1041 = vsel %vm610, %v1037, 0
          %v1044 = vsel %vm610, %v1039, 0
          %1046 = vmatprep.subr.bf16.mxu0 0
          %1047 = vmatpush1.bf16.xpose.msra.mxu0 0
          %1048 = vmatprep.subr.bf16.mxu0 0
          %1049 = vmatpush1.bf16.xpose.msra.mxu0 0
          %1050 = vmatprep.subr.bf16.mxu0 0
          %1051 = vmatpush1.bf16.xpose.msra.mxu0 0
          %1052 = vmatprep.subr.bf16.mxu0 0
          %1053 = vmatpush1.bf16.xpose.msra.mxu0 0
          %1054 = vmatprep.subr.bf16.mxu0 0
          %1055 = vmatpush1.bf16.xpose.msra.mxu0 0
          %1056 = vmatprep.subr.bf16.mxu0 0
          %1057 = vmatpush1.bf16.xpose.msra.mxu0 0
          %1058 = vmatprep.subr.bf16.mxu0 0
          %1059 = vmatpush1.bf16.xpose.msra.mxu0 0
          %1060 = vmatprep.subr.bf16.mxu0 0
          %1061 = vmatpush1.bf16.xpose.msra.mxu0 %v1044
          %1062 = vmatprep.subr.bf16.mxu0 0
          %1063 = vmatpush2.bf16.xpose.msra.mxu0 0
          %1064 = vmatprep.subr.bf16.mxu0 0
          %1065 = vmatpush2.bf16.xpose.msra.mxu0 0
          %1066 = vmatprep.subr.bf16.mxu0 0
          %1067 = vmatpush2.bf16.xpose.msra.mxu0 0
          %1068 = vmatprep.subr.bf16.mxu0 0
          %1069 = vmatpush2.bf16.xpose.msra.mxu0 0
          %1070 = vmatprep.subr.bf16.mxu0 0
          %1071 = vmatpush2.bf16.xpose.msra.mxu0 0
          %1072 = vmatprep.subr.bf16.mxu0 0
          %1073 = vmatpush2.bf16.xpose.msra.mxu0 0
          %1074 = vmatprep.subr.bf16.mxu0 0
          %1075 = vmatpush2.bf16.xpose.msra.mxu0 0
          %1076 = vmatprep.subr.bf16.mxu0 0
          %1077 = vmatpush2.bf16.xpose.msra.mxu0 0
          %1078 = vmatprep.mubr.bf16.mxu0 0
          %1079 = vmatmul.mubr.bf16.gmra.mxu0 %v1041
          %v1080 = vpop.f32.mrf.mxu0
          %v1081 = vadd.f32 %v1035, %v1080
          %v1082 = vpop.f32.mrf.mxu0
          %v1083 = vpop.f32.mrf.mxu0
          %v1084 = vpop.f32.mrf.mxu0
          %1085 = vdwg.mxu0
          %v1086 = vsel %vm610, %v1081, -inf
          %1087 = vmax.xlane.f32.xlu0 %v1086
          %v1088 = vpop.xlane.xlu0 %1087
          %v1089 = vsub.f32 %v1081, %v1088
          %v1090 = vmul.f32 %v1089, 1.442695
          %v1091 = vpow.pop %v1090
          %v1092 = vsel %vm610, %v1091, 0.0
          %1093 = vadd.xlane.f32.xlu0 %v1092
          %v1094 = vpop.xlane.xlu0 %1093
          %v1095 = vrcp.pop %v1094
          %v1096 = vmul.f32 %v1091, %v1095
          %v1097 = vpack.c.bf16 %v1096, %v1096
          %1098 = vrot.lane.b32.xlu0 %v690, 40
          %v1099 = vpop.permute.xlu0 %1098
          %v1101 = vsel %vm610, %v1097, 0
          %v1104 = vsel %vm758, %v1099, 0
          %1106 = vmatprep.subr.bf16.mxu0 0
          %1107 = vmatpush1.bf16.msra.mxu0 0
          %1108 = vmatprep.subr.bf16.mxu0 0
          %1109 = vmatpush1.bf16.msra.mxu0 0
          %1110 = vmatprep.subr.bf16.mxu0 0
          %1111 = vmatpush1.bf16.msra.mxu0 0
          %1112 = vmatprep.subr.bf16.mxu0 0
          %1113 = vmatpush1.bf16.msra.mxu0 0
          %1114 = vmatprep.subr.bf16.mxu0 0
          %1115 = vmatpush1.bf16.msra.mxu0 0
          %1116 = vmatprep.subr.bf16.mxu0 0
          %1117 = vmatpush1.bf16.msra.mxu0 0
          %1118 = vmatprep.subr.bf16.mxu0 0
          %1119 = vmatpush1.bf16.msra.mxu0 0
          %1120 = vmatprep.subr.bf16.mxu0 0
          %1121 = vmatpush1.bf16.msra.mxu0 %v1104
          %1122 = vmatprep.subr.bf16.mxu0 0
          %1123 = vmatpush2.bf16.msra.mxu0 0
          %1124 = vmatprep.subr.bf16.mxu0 0
          %1125 = vmatpush2.bf16.msra.mxu0 0
          %1126 = vmatprep.subr.bf16.mxu0 0
          %1127 = vmatpush2.bf16.msra.mxu0 0
          %1128 = vmatprep.subr.bf16.mxu0 0
          %1129 = vmatpush2.bf16.msra.mxu0 0
          %1130 = vmatprep.subr.bf16.mxu0 0
          %1131 = vmatpush2.bf16.msra.mxu0 0
          %1132 = vmatprep.subr.bf16.mxu0 0
          %1133 = vmatpush2.bf16.msra.mxu0 0
          %1134 = vmatprep.subr.bf16.mxu0 0
          %1135 = vmatpush2.bf16.msra.mxu0 0
          %1136 = vmatprep.subr.bf16.mxu0 0
          %1137 = vmatpush2.bf16.msra.mxu0 0
          %1138 = vmatprep.mubr.bf16.mxu0 0
          %1139 = vmatmul.mubr.bf16.gmra.mxu0 %v1101
          %v1140 = vpop.f32.mrf.mxu0
          %v1141 = vadd.f32 0.0, %v1140
          %v1142 = vpop.f32.mrf.mxu0
          %v1143 = vpop.f32.mrf.mxu0
          %v1144 = vpop.f32.mrf.mxu0
          %1145 = vdwg.mxu0
          %1147 = vrot.lane.b32.xlu0 %v1141, 8
          %v1148 = vpop.permute.xlu0 %1147
          %v1150 = vsel %vm610, %v1029, %v1148
          %v1151 = vpack.c.bf16 %v1150, %v1150
          %v1153 = vunpack.c.l.b16 %v1151
          %v1154 = vpack.c.b16 %v1153, %v1153
          %1155 = vrot.lane.b32.xlu0 %v1154, 16
          %v1156 = vpop.permute.xlu0 %1155
          %vm1158 = vcmask 257152
          %1159 = vst.msk [vmem:[#allocation3] sm:$0xf] %vm1158, %v1156
          %v1160 = vld [vmem:[#allocation3] sm:$0xf]
          %v1161 = vld [vmem:[#allocation9] sm:$0xf]
          %v1162 = vld [vmem:[#allocation9 + $0x4] sm:$0xf]
          %v1163 = vld [vmem:[#allocation9 + $0x8] sm:$0xf]
          %v1164 = vld [vmem:[#allocation9 + $0xc] sm:$0xf]
          %v1165 = vld [vmem:[#allocation10] sm:$0x1]
          %v1167 = vlaneseq
          %v1168 = vshrl.u32 %v1167, 7
          %v1169 = vsub.s32 0, %v1168
          %v1170 = vrot.slane %v1165, %v1169
          %v1176 = vunpack.c.l.b16 %v1161
          %v1177 = vunpack.c.l.b16 %v1162
          %v1178 = vunpack.c.l.b16 %v1163
          %v1179 = vunpack.c.l.b16 %v1164
          %v1180 = vpack.c.b16 %v1177, %v1176
          %v1181 = vpack.c.b16 %v1179, %v1178
          %v1185 = vsel %vm646, %v1160, 0
          %1187 = vmatprep.subr.bf16.mxu0 0
          %1188 = vmatpush1.bf16.msra.mxu0 0
          %1189 = vmatprep.subr.bf16.mxu0 0
          %1190 = vmatpush1.bf16.msra.mxu0 0
          %1191 = vmatprep.subr.bf16.mxu0 0
          %1192 = vmatpush1.bf16.msra.mxu0 0
          %1193 = vmatprep.subr.bf16.mxu0 0
          %1194 = vmatpush1.bf16.msra.mxu0 0
          %1195 = vmatprep.subr.bf16.mxu0 0
          %1196 = vmatpush1.bf16.msra.mxu0 0
          %1197 = vmatprep.subr.bf16.mxu0 0
          %1198 = vmatpush1.bf16.msra.mxu0 0
          %1199 = vmatprep.subr.bf16.mxu0 0
          %1200 = vmatpush1.bf16.msra.mxu0 %v1181
          %1201 = vmatprep.subr.bf16.mxu0 0
          %1202 = vmatpush1.bf16.msra.mxu0 %v1180
          %1203 = vmatprep.subr.bf16.mxu0 0
          %1204 = vmatpush2.bf16.msra.mxu0 0
          %1205 = vmatprep.subr.bf16.mxu0 0
          %1206 = vmatpush2.bf16.msra.mxu0 0
          %1207 = vmatprep.subr.bf16.mxu0 0
          %1208 = vmatpush2.bf16.msra.mxu0 0
          %1209 = vmatprep.subr.bf16.mxu0 0
          %1210 = vmatpush2.bf16.msra.mxu0 0
          %1211 = vmatprep.subr.bf16.mxu0 0
          %1212 = vmatpush2.bf16.msra.mxu0 0
          %1213 = vmatprep.subr.bf16.mxu0 0
          %1214 = vmatpush2.bf16.msra.mxu0 0
          %1215 = vmatprep.subr.bf16.mxu0 0
          %1216 = vmatpush2.bf16.msra.mxu0 0
          %1217 = vmatprep.subr.bf16.mxu0 0
          %1218 = vmatpush2.bf16.msra.mxu0 0
          %1219 = vmatprep.mubr.bf16.mxu0 0
          %1220 = vmatmul.mubr.bf16.gmra.mxu0 %v1185
          %v1221 = vpop.f32.mrf.mxu0
          %v1222 = vadd.f32 %v1170, %v1221
          %v1223 = vpop.f32.mrf.mxu0
          %v1224 = vpop.f32.mrf.mxu0
          %v1225 = vpop.f32.mrf.mxu0
          %1226 = vdwg.mxu0
          %v1227 = vadd.f32 %v1222, %v621
          %v1228 = vld [vmem:[#allocation12] sm:$0x1]
          %v1229 = vld [vmem:[#allocation13] sm:$0x1]
          %v1230 = vsel %vm646, %v1227, 0.0
          %1231 = vadd.xlane.f32.xlu0 %v1230
          %v1232 = vpop.xlane.xlu0 %1231
          %v1233 = vrcp.pop 32.0
          %v1234 = vmul.f32 %v1232, %v1233
          %v1235 = vsub.f32 %v1227, %v1234
          %v1236 = vmul.f32 %v1235, %v1235
          %v1237 = vsel %vm646, %v1236, 0.0
          %1238 = vadd.xlane.f32.xlu0 %v1237
          %v1239 = vpop.xlane.xlu0 %1238
          %v1240 = vmul.f32 %v1239, 0.032258064
          %v1241 = vrsqrt.pop %v1240
          %v1242 = vmul.f32 %v1240, %v1241
          %vm1243 = vcmp.eq.f32.partialorder %v1240, inf
          %v1244 = vsel %vm1243, %v1240, %v1242
          %vm1245 = vcmp.eq.f32.partialorder %v1240, 0.0
          %v1246 = vand.u32 %v1240, 2147483648
          %v1247 = vsel %vm1245, %v1246, %v1244
          %v1248 = vadd.f32 %v1247, 1e-06
          %v1249 = vrcp.pop %v1248
          %v1250 = vmul.f32 %v1235, %v1249
          %v1252 = vlaneseq
          %v1253 = vshrl.u32 %v1252, 7
          %v1254 = vsub.s32 0, %v1253
          %v1255 = vrot.slane %v1228, %v1254
          %v1257 = vmul.f32 %v1250, %v1255
          %v1259 = vlaneseq
          %v1260 = vshrl.u32 %v1259, 7
          %v1261 = vsub.s32 0, %v1260
          %v1262 = vrot.slane %v1229, %v1261
          %v1264 = vadd.f32 %v1257, %v1262
          %v1265 = vpack.c.bf16 %v1264, %v1264
          %v1266 = vld [vmem:[%s9] sm:$0xf]
          %v1267 = vld [vmem:[%s9 + $0x4] sm:$0xf]
          %v1268 = vld [vmem:[%s9 + $0x8] sm:$0xf]
          %v1269 = vld [vmem:[%s9 + $0xc] sm:$0xf]
          %v1270 = vld [vmem:[%s10] sm:$0x1]
          %v1272 = vlaneseq
          %v1273 = vshrl.u32 %v1272, 7
          %v1274 = vsub.s32 0, %v1273
          %v1275 = vrot.slane %v1270, %v1274
          %v1281 = vunpack.c.l.b16 %v1266
          %v1282 = vunpack.c.l.b16 %v1267
          %v1283 = vunpack.c.l.b16 %v1268
          %v1284 = vunpack.c.l.b16 %v1269
          %v1285 = vpack.c.b16 %v1282, %v1281
          %v1286 = vpack.c.b16 %v1284, %v1283
          %v1290 = vsel %vm646, %v1265, 0
          %1292 = vmatprep.subr.bf16.mxu0 0
          %1293 = vmatpush1.bf16.msra.mxu0 0
          %1294 = vmatprep.subr.bf16.mxu0 0
          %1295 = vmatpush1.bf16.msra.mxu0 0
          %1296 = vmatprep.subr.bf16.mxu0 0
          %1297 = vmatpush1.bf16.msra.mxu0 0
          %1298 = vmatprep.subr.bf16.mxu0 0
          %1299 = vmatpush1.bf16.msra.mxu0 0
          %1300 = vmatprep.subr.bf16.mxu0 0
          %1301 = vmatpush1.bf16.msra.mxu0 0
          %1302 = vmatprep.subr.bf16.mxu0 0
          %1303 = vmatpush1.bf16.msra.mxu0 0
          %1304 = vmatprep.subr.bf16.mxu0 0
          %1305 = vmatpush1.bf16.msra.mxu0 %v1286
          %1306 = vmatprep.subr.bf16.mxu0 0
          %1307 = vmatpush1.bf16.msra.mxu0 %v1285
          %1308 = vmatprep.subr.bf16.mxu0 0
          %1309 = vmatpush2.bf16.msra.mxu0 0
          %1310 = vmatprep.subr.bf16.mxu0 0
          %1311 = vmatpush2.bf16.msra.mxu0 0
          %1312 = vmatprep.subr.bf16.mxu0 0
          %1313 = vmatpush2.bf16.msra.mxu0 0
          %1314 = vmatprep.subr.bf16.mxu0 0
          %1315 = vmatpush2.bf16.msra.mxu0 0
          %1316 = vmatprep.subr.bf16.mxu0 0
          %1317 = vmatpush2.bf16.msra.mxu0 0
          %1318 = vmatprep.subr.bf16.mxu0 0
          %1319 = vmatpush2.bf16.msra.mxu0 0
          %1320 = vmatprep.subr.bf16.mxu0 0
          %1321 = vmatpush2.bf16.msra.mxu0 0
          %1322 = vmatprep.subr.bf16.mxu0 0
          %1323 = vmatpush2.bf16.msra.mxu0 0
          %1324 = vmatprep.mubr.bf16.mxu0 0
          %1325 = vmatmul.mubr.bf16.gmra.mxu0 %v1290
          %v1326 = vpop.f32.mrf.mxu0
          %v1327 = vadd.f32 %v1275, %v1326
          %v1328 = vpop.f32.mrf.mxu0
          %v1329 = vpop.f32.mrf.mxu0
          %v1330 = vpop.f32.mrf.mxu0
          %1331 = vdwg.mxu0
          %v1332 = vmul.f32 %v1327, 0.5
          %v1333 = vmul.f32 %v1327, 0.70710677
          %v1334 = vand.u32 2147483647, %v1333
          %v1335 = vmul.f32 %v1334, 0.3275911
          %v1336 = vadd.f32 %v1335, 1.0
          %v1337 = vrcp.pop %v1336
          %v1338 = vmul.f32 %v1337, 1.0614054
          %v1339 = vadd.f32 %v1338, -1.4531521
          %v1340 = vmul.f32 %v1339, %v1337
          %v1341 = vadd.f32 %v1340, 1.4214138
          %v1342 = vmul.f32 %v1341, %v1337
          %v1343 = vadd.f32 %v1342, -0.28449672
          %v1344 = vmul.f32 %v1343, %v1337
          %v1345 = vadd.f32 %v1344, 0.2548296
          %v1346 = vmul.f32 %v1345, %v1337
          %v1347 = vsub.f32 0.0, %v1334
          %v1348 = vmul.f32 %v1347, %v1334
          %v1349 = vmul.f32 %v1348, 1.442695
          %v1350 = vpow.pop %v1349
          %v1351 = vmul.f32 %v1346, %v1350
          %v1352 = vsub.f32 1.0, %v1351
          %vm1353 = vcmp.lt.f32.partialorder %v1333, 0.0
          %v1354 = vsub.f32 0.0, %v1352
          %v1355 = vsel %vm1353, %v1354, %v1352
          %v1356 = vadd.f32 %v1355, 1.0
          %v1357 = vmul.f32 %v1332, %v1356
          %v1358 = vpack.c.bf16 %v1357, %v1357
          %v1359 = vld [vmem:[%s11] sm:$0xf]
          %v1360 = vld [vmem:[%s11 + $0x4] sm:$0xf]
          %v1361 = vld [vmem:[%s11 + $0x8] sm:$0xf]
          %v1362 = vld [vmem:[%s11 + $0xc] sm:$0xf]
          %v1363 = vld [vmem:[%s11 + $0x10] sm:$0xf]
          %v1364 = vld [vmem:[%s11 + $0x14] sm:$0xf]
          %v1365 = vld [vmem:[%s11 + $0x18] sm:$0xf]
          %v1366 = vld [vmem:[%s11 + $0x1c] sm:$0xf]
          %v1367 = vld [vmem:[%s12] sm:$0x1]
          %v1369 = vlaneseq
          %v1370 = vshrl.u32 %v1369, 7
          %v1371 = vsub.s32 0, %v1370
          %v1372 = vrot.slane %v1367, %v1371
          %v1382 = vunpack.c.l.b16 %v1359
          %v1383 = vunpack.c.l.b16 %v1360
          %v1384 = vunpack.c.l.b16 %v1361
          %v1385 = vunpack.c.l.b16 %v1362
          %v1386 = vunpack.c.l.b16 %v1363
          %v1387 = vunpack.c.l.b16 %v1364
          %v1388 = vunpack.c.l.b16 %v1365
          %v1389 = vunpack.c.l.b16 %v1366
          %v1390 = vpack.c.b16 %v1383, %v1382
          %v1391 = vpack.c.b16 %v1385, %v1384
          %v1392 = vpack.c.b16 %v1387, %v1386
          %v1393 = vpack.c.b16 %v1389, %v1388
          %vm1398 = vcmask 523264
          %v1400 = vsel %vm1398, %v1358, 0
          %1402 = vmatprep.subr.bf16.mxu0 0
          %1403 = vmatpush1.bf16.msra.mxu0 0
          %1404 = vmatprep.subr.bf16.mxu0 0
          %1405 = vmatpush1.bf16.msra.mxu0 0
          %1406 = vmatprep.subr.bf16.mxu0 0
          %1407 = vmatpush1.bf16.msra.mxu0 0
          %1408 = vmatprep.subr.bf16.mxu0 0
          %1409 = vmatpush1.bf16.msra.mxu0 0
          %1410 = vmatprep.subr.bf16.mxu0 0
          %1411 = vmatpush1.bf16.msra.mxu0 %v1393
          %1412 = vmatprep.subr.bf16.mxu0 0
          %1413 = vmatpush1.bf16.msra.mxu0 %v1392
          %1414 = vmatprep.subr.bf16.mxu0 0
          %1415 = vmatpush1.bf16.msra.mxu0 %v1391
          %1416 = vmatprep.subr.bf16.mxu0 0
          %1417 = vmatpush1.bf16.msra.mxu0 %v1390
          %1418 = vmatprep.subr.bf16.mxu0 0
          %1419 = vmatpush2.bf16.msra.mxu0 0
          %1420 = vmatprep.subr.bf16.mxu0 0
          %1421 = vmatpush2.bf16.msra.mxu0 0
          %1422 = vmatprep.subr.bf16.mxu0 0
          %1423 = vmatpush2.bf16.msra.mxu0 0
          %1424 = vmatprep.subr.bf16.mxu0 0
          %1425 = vmatpush2.bf16.msra.mxu0 0
          %1426 = vmatprep.subr.bf16.mxu0 0
          %1427 = vmatpush2.bf16.msra.mxu0 0
          %1428 = vmatprep.subr.bf16.mxu0 0
          %1429 = vmatpush2.bf16.msra.mxu0 0
          %1430 = vmatprep.subr.bf16.mxu0 0
          %1431 = vmatpush2.bf16.msra.mxu0 0
          %1432 = vmatprep.subr.bf16.mxu0 0
          %1433 = vmatpush2.bf16.msra.mxu0 0
          %1434 = vmatprep.mubr.bf16.mxu0 0
          %1435 = vmatmul.mubr.bf16.gmra.mxu0 %v1400
          %v1436 = vpop.f32.mrf.mxu0
          %v1437 = vadd.f32 %v1372, %v1436
          %v1438 = vpop.f32.mrf.mxu0
          %v1439 = vpop.f32.mrf.mxu0
          %v1440 = vpop.f32.mrf.mxu0
          %1441 = vdwg.mxu0
          %v1442 = vadd.f32 %v1437, %v1264
          %v1443 = vld [vmem:[%s13] sm:$0x1]
          %v1444 = vld [vmem:[%s14] sm:$0x1]
          %v1445 = vsel %vm646, %v1442, 0.0
          %1446 = vadd.xlane.f32.xlu0 %v1445
          %v1447 = vpop.xlane.xlu0 %1446
          %v1448 = vmul.f32 %v1447, %v1233
          %v1449 = vsub.f32 %v1442, %v1448
          %v1450 = vmul.f32 %v1449, %v1449
          %v1451 = vsel %vm646, %v1450, 0.0
          %1452 = vadd.xlane.f32.xlu0 %v1451
          %v1453 = vpop.xlane.xlu0 %1452
          %v1454 = vmul.f32 %v1453, 0.032258064
          %v1455 = vrsqrt.pop %v1454
          %v1456 = vmul.f32 %v1454, %v1455
          %vm1457 = vcmp.eq.f32.partialorder %v1454, inf
          %v1458 = vsel %vm1457, %v1454, %v1456
          %vm1459 = vcmp.eq.f32.partialorder %v1454, 0.0
          %v1460 = vand.u32 %v1454, 2147483648
          %v1461 = vsel %vm1459, %v1460, %v1458
          %v1462 = vadd.f32 %v1461, 1e-06
          %v1463 = vrcp.pop %v1462
          %v1464 = vmul.f32 %v1449, %v1463
          %v1466 = vlaneseq
          %v1467 = vshrl.u32 %v1466, 7
          %v1468 = vsub.s32 0, %v1467
          %v1469 = vrot.slane %v1443, %v1468
          %v1471 = vmul.f32 %v1464, %v1469
          %v1473 = vlaneseq
          %v1474 = vshrl.u32 %v1473, 7
          %v1475 = vsub.s32 0, %v1474
          %v1476 = vrot.slane %v1444, %v1475
          %v1478 = vadd.f32 %v1471, %v1476
        $region109: #{tpu_custom_call.1} parent=79 // loop_footer
          %s620 = sadd.s32 1, %s616
        $region110: #{tpu_custom_call.1} parent=79 // loop_footer_branch
          %615 = sbr.rel target = $region106
        $region111: #{tpu_custom_call.1} parent=79 // loop_exit
          _
        %vm1479 = vcmask 261120
        %1480 = vst.msk [vmem:[%s584] sm:$0xff] %vm1479, %v621
        %s1481 = sand.u32 %s368, 1
        %s1482 = scalar_lea.sflag [#allocation6], %s1481
        %s1483 = sand.u32 %s368, 1
        %s1484 = smul.addr %s1483, 8
        %s1485 = scalar_lea.vmem [#allocation15], %s1484
        // Predicated region
        $region112: #{tpu_custom_call.1} parent=79 // pred_check
          %p1486 = pneg %p378
        $region113: #{tpu_custom_call.1} parent=79 // pred_check_branch
          %1488 = sbr.rel (%p1486) target = $region115
        $region114: #{tpu_custom_call.1} parent=79 // pred_region
          %s1490 = ssub.s32 128, 128
          %1491 = vsyncadd %s1482, %s1490
          %s1492 = smul.addr %s35, 128
          %s1493 = scalar_lea.hbm %s15, %s1492
          %s1495 = sshll.u32 %s1485, 4
          %s1496 = int_to_ptr.vmem [resolvable:$true] %s1495
          %1498 = dma.vmem_to_hbm [thread:$0]  %s1496, 128, %s1493, %s1482
        $region115: #{tpu_custom_call.1} parent=79 // pred_fallthru
          _
      $region80: #{tpu_custom_call.1} parent=5 // pred_fallthru
        _
      %p1499 = scmp.le.s32.totalorder 2, %s30
      // Predicated region
      $region116: #{tpu_custom_call.1} parent=5 // pred_check
        %p1500 = pneg %p1499
      $region117: #{tpu_custom_call.1} parent=5 // pred_check_branch
        %1502 = sbr.rel (%p1500) target = $region119
      $region118: #{tpu_custom_call.1} parent=5 // pred_region
        %s1503 = ssub.s32 %s30, 2
        // Predicated region
        $region120: #{tpu_custom_call.1} parent=118 // pred_check
          %p1504 = pneg %p384
        $region121: #{tpu_custom_call.1} parent=118 // pred_check_branch
          %1506 = sbr.rel (%p1504) target = $region123
        $region122: #{tpu_custom_call.1} parent=118 // pred_region
          %s1507 = sand.u32 %s369, 1
          %s1508 = scalar_lea.sflag [#allocation6], %s1507
          %s1509 = sand.u32 %s369, 1
          %s1510 = smul.addr %s1509, 8
          %s1511 = scalar_lea.vmem [#allocation15], %s1510
          %1512 = dma.done %s1508, 128
        $region123: #{tpu_custom_call.1} parent=118 // pred_fallthru
          _
      $region119: #{tpu_custom_call.1} parent=5 // pred_fallthru
        _
    $region6: #{tpu_custom_call.1} parent=1 // loop_footer
      %s34 = sadd.s32 1, %s30
    $region7: #{tpu_custom_call.1} parent=1 // loop_footer_branch
      %29 = sbr.rel target = $region3
    $region8: #{tpu_custom_call.1} parent=1 // loop_exit
      _
    %1513 = vsyncpa [#allocation5], 1
    %s1514 = scalar_lea.sflag [#allocation5], 1
    %1515 = vsyncpa %s1514, 1
    %1516 = vsyncpa [#allocation8], 1
    %1517 = vsyncpa [#allocation11], 1
    %1518 = vsyncpa [#allocation14], 1
    %1519 = vsyncpa [#allocation6], 1
    %s1520 = scalar_lea.sflag [#allocation6], 1
    %1521 = vsyncpa %s1520, 1

</llo_original>
